<compile_context>
chip_gen: v7x
topology: tpu7x:2x2x1
jax: 0.10.0
libtpu: 0.0.40
codegen_flags: <defaults>
</compile_context>

<pallas_src>
import functools
import math

import jax
import jax.numpy as jnp
from jax import lax
from jax.experimental import pallas as pl
from jax.experimental.pallas import tpu as pltpu


def _pick_tile(total, target):
    """Largest divisor of `total` that is <= target and sublane-aligned (mult of 8), else `total`."""
    if total <= target:
        return total
    for t in range(target, 0, -1):
        if total % t == 0 and t % 8 == 0:
            return t
    return total  # e.g. prime lengths: fall back to a single untiled slab


def _cross_attn_kernel(*refs, n_heads, d_head, s_chunk, n_s_chunks, has_mask, use_acc):
    # ref order: q (TL, H*E), k (S, H*E), v (S, H*D), [mask (n_s, TL, TS)], out (TL, H*D),
    #            [acc scratch (TL, H*D) f32]
    idx = 0
    q_ref = refs[idx]; idx += 1
    k_ref = refs[idx]; idx += 1
    v_ref = refs[idx]; idx += 1
    mask_ref = None
    if has_mask:
        mask_ref = refs[idx]; idx += 1
    o_ref = refs[idx]; idx += 1
    acc_ref = refs[idx] if use_acc else None

    H = n_heads
    E = D = d_head
    TL = q_ref.shape[0]
    scale = 1.0 / math.sqrt(E)

    # Hoisted softmax scale: one (TL, H*E) multiply instead of H (TL, S) multiplies on the scores.
    q = q_ref[...] * scale

    # contract last axes of both operands: (TL,E) x (TS,E) -> (TL,TS), no k transpose materialized
    dn_qk = (((1,), (1,)), ((), ()))
    # standard matmul: (TL,TS) x (TS,D) -> (TL,D)
    dn_av = (((1,), (0,)), ((), ()))

    for h in range(H):                       # static unroll; each head is stored before the next
        q_h = q[:, h * E:(h + 1) * E]        # (TL, E)

        def s_step(j, carry, h=h, q_h=q_h):
            m_prev, l_prev, acc_prev = carry
            start = j * s_chunk
            if not isinstance(start, int):
                start = pl.multiple_of(start, s_chunk)
            k_h = k_ref[pl.ds(start, s_chunk), h * E:(h + 1) * E]   # dynamic sublane slice
            v_h = v_ref[pl.ds(start, s_chunk), h * D:(h + 1) * D]
            s = lax.dot_general(q_h, k_h, dn_qk, preferred_element_type=jnp.float32)
            m_new = jnp.maximum(m_prev, jnp.max(s, axis=-1, keepdims=True))
            alpha = jnp.exp(m_prev - m_new)                         # 0 on the first chunk
            e = jnp.exp(s - m_new)
            # running denominator is UNMASKED (mask is applied AFTER softmax, as in MaskAttention)
            l_new = alpha * l_prev + jnp.sum(e, axis=-1, keepdims=True)
            p = e.astype(v_h.dtype)                                 # keep A@V on native MXU path
            if has_mask:
                p = p * mask_ref[j]                                 # (TL, TS), compute dtype
            acc_new = alpha * acc_prev + lax.dot_general(
                p, v_h, dn_av, preferred_element_type=jnp.float32)
            return m_new, l_new, acc_new

        init = (jnp.full((TL, 1), -jnp.inf, jnp.float32),
                jnp.zeros((TL, 1), jnp.float32),
                jnp.zeros((TL, D), jnp.float32))
        if n_s_chunks == 1:
            m_f, l_f, acc_f = s_step(0, init)
        else:
            m_f, l_f, acc_f = lax.fori_loop(0, n_s_chunks, s_step, init)

        # exact reciprocal of the (TL, 1) denominator — nearly free, avoids approx-recip error
        o_h = acc_f * (1.0 / l_f)                                    # (TL, D) f32

        if use_acc:
            acc_ref[:, h * D:(h + 1) * D] = o_h                      # bound live range in VMEM
        else:
            o_ref[:, h * D:(h + 1) * D] = o_h.astype(o_ref.dtype)    # 128-aligned direct store

    if use_acc:
        o_ref[...] = acc_ref[...].astype(o_ref.dtype)                # one lane-dense cast+store


def cross_attention(queries, keys, values, mask=None, *, n_heads, mix=True,
                    l_tile=None, s_chunk=None, compute_dtype=None):
    """queries: (B, L, d_model), keys/values: (B, S, d_model), mask: (L, S) or None."""
    B, L, d_model = queries.shape
    _, S, _ = keys.shape
    H = n_heads
    assert d_model % H == 0, "d_model must be divisible by n_heads"
    E = D = d_model // H

    cdt = compute_dtype if compute_dtype is not None else queries.dtype
    q = queries.astype(cdt)
    k = keys.astype(cdt)
    v = values.astype(cdt)
    has_mask = mask is not None
    # Mask kept in the compute dtype (halves mask DMA for bf16).
    # TODO(synk): keep the mask f32 on v5e (no bf16 VPU) when compute_dtype is bf16.
    m = mask.astype(cdt) if has_mask else None

    TL = l_tile if l_tile is not None else _pick_tile(L, 256)
    assert L % TL == 0 and (TL % 8 == 0 or TL == L), (L, TL)
    TS = s_chunk if s_chunk is not None else _pick_tile(S, 512)
    assert S % TS == 0 and (TS % 8 == 0 or TS == S), (S, TS)
    n_l = L // TL
    n_s = S // TS
    use_acc = (D % 128 != 0)

    kernel = functools.partial(
        _cross_attn_kernel, n_heads=H, d_head=E, s_chunk=TS, n_s_chunks=n_s,
        has_mask=has_mask, use_acc=use_acc)

    in_specs = [
        pl.BlockSpec((None, TL, d_model), lambda b, li: (b, li, 0)),   # q: streamed per L tile
        pl.BlockSpec((None, S, d_model), lambda b, li: (b, 0, 0)),     # k: resident across L tiles
        pl.BlockSpec((None, S, d_model), lambda b, li: (b, 0, 0)),     # v: resident across L tiles
    ]
    args = [q, k, v]
    if has_mask:
        # pre-chunk the mask so the kernel only indexes a leading dim per S chunk
        m_chunked = m.reshape(L, n_s, TS).transpose(1, 0, 2)           # (n_s, L, TS)
        in_specs.append(pl.BlockSpec((n_s, TL, TS), lambda b, li: (0, li, 0)))
        args.append(m_chunked)

    scratch_shapes = [pltpu.VMEM((TL, d_model), jnp.float32)] if use_acc else []

    isz = jnp.dtype(cdt).itemsize
    est = (2 * TL * d_model * isz            # q (double-buffered)
           + 2 * 2 * S * d_model * isz       # k + v (double-buffered, resident across li)
           + (2 * TL * S * isz if has_mask else 0)
           + 2 * TL * d_model * isz          # out
           + (TL * d_model * 4 if use_acc else 0)
           + 4 * TL * TS * 4 + 2 * TL * d_model * 4)   # f32 transients headroom
    # Cap at 64 MiB so the same config stays valid on v7x's smaller physical VMEM.
    vmem_limit = int(min(max(est * 5 // 4, 32 * 1024 * 1024), 64 * 1024 * 1024))

    flops = 4 * B * L * S * d_model          # QK^T + A@V
    bytes_accessed = int((q.size + k.size + v.size) * isz + B * L * d_model * isz
                         + (m.size * isz if has_mask else 0))
    cost = pl.CostEstimate(flops=flops, transcendentals=B * H * L * S,
                           bytes_accessed=bytes_accessed)

    out = pl.pallas_call(
        kernel,
        out_shape=jax.ShapeDtypeStruct((B, L, d_model), cdt),
        grid_spec=pltpu.PrefetchScalarGridSpec(
            num_scalar_prefetch=0,
            grid=(B, n_l),
            in_specs=in_specs,
            out_specs=pl.BlockSpec((None, TL, d_model), lambda b, li: (b, li, 0)),
            scratch_shapes=scratch_shapes,
        ),
        compiler_params=pltpu.CompilerParams(
            dimension_semantics=("parallel", "parallel"),
            vmem_limit_bytes=vmem_limit,
        ),
        cost_estimate=cost,
    )(*args)

    # out[b, l, h*D + d] == V[b, l, h, d]  (head-concat per token == torch mix=False layout)
    if mix:
        # TODO(synk): fuse this head/seq relayout into the kernel output store (L % H == 0 case).
        out = out.reshape(B, L, H, D).transpose(0, 2, 1, 3).reshape(B, L, H * D)
    return out


def _reference(queries, keys, values, mask, n_heads, mix=True):
    """Pure-JAX reference mirroring the PyTorch code path."""
    B, L, d_model = queries.shape
    _, S, _ = keys.shape
    H = n_heads
    E = d_model // H
    q = queries.reshape(B, L, H, E)
    k = keys.reshape(B, S, H, E)
    v = values.reshape(B, S, H, E)
    scale = 1.0 / math.sqrt(E)
    scores = jnp.einsum("blhe,bshe->bhls", q, k)
    A = jax.nn.softmax(scale * scores, axis=-1)
    if mask is not None:
        A = A * mask
    V = jnp.einsum("bhls,bshd->blhd", A, v)  # (B, L, H, D)
    if mix:
        V = jnp.transpose(V, (0, 2, 1, 3))   # (B, H, L, D)
    return V.reshape(B, L, H * E)


if __name__ == "__main__":
    B, L, S, d_model, H = 2, 16, 16, 32, 4

    key = jax.random.PRNGKey(0)
    kq, kk, kv, km = jax.random.split(key, 4)
    queries = jax.random.normal(kq, (B, L, d_model), dtype=jnp.float32)
    keys = jax.random.normal(kk, (B, S, d_model), dtype=jnp.float32)
    values = jax.random.normal(kv, (B, S, d_model), dtype=jnp.float32)
    # multiplicative (L, S) mask, applied after softmax (as in MaskAttention)
    mask = (jax.random.uniform(km, (L, S)) > 0.3).astype(jnp.float32)

    # 1) masked, mix=True, default (single L tile, single S chunk) path
    out = jax.block_until_ready(
        cross_attention(queries, keys, values, mask, n_heads=H, mix=True))
    ref = _reference(queries, keys, values, mask, H, mix=True)
    assert out.shape == (B, L, d_model), out.shape
    assert jnp.allclose(out, ref, atol=2e-3, rtol=2e-3), float(jnp.max(jnp.abs(out - ref)))

    # 2) masked, mix=True, forced L tiling + 2-chunk online softmax (exercises the flash path)
    out_t = jax.block_until_ready(
        cross_attention(queries, keys, values, mask, n_heads=H, mix=True, l_tile=8, s_chunk=8))
    assert jnp.allclose(out_t, ref, atol=2e-3, rtol=2e-3), float(jnp.max(jnp.abs(out_t - ref)))

    # 3) mask-free, mix=False (separate compiled variant: no mask DMA / multiply)
    out2 = jax.block_until_ready(
        cross_attention(queries, keys, values, None, n_heads=H, mix=False))
    ref2 = _reference(queries, keys, values, None, H, mix=False)
    assert jnp.allclose(out2, ref2, atol=2e-3, rtol=2e-3), float(jnp.max(jnp.abs(out2 - ref2)))

    # 4) bf16 compute path (inference fast path); compare against a bf16-input reference
    out_bf = jax.block_until_ready(
        cross_attention(queries, keys, values, mask, n_heads=H, mix=True,
                        compute_dtype=jnp.bfloat16, l_tile=8, s_chunk=8))
    ref_bf = _reference(queries.astype(jnp.bfloat16).astype(jnp.float32),
                        keys.astype(jnp.bfloat16).astype(jnp.float32),
                        values.astype(jnp.bfloat16).astype(jnp.float32),
                        mask, H, mix=True)
    diff = jnp.max(jnp.abs(out_bf.astype(jnp.float32) - ref_bf))
    assert jnp.allclose(out_bf.astype(jnp.float32), ref_bf, atol=5e-2, rtol=5e-2), float(diff)

    print("KERNEL_OK")
</pallas_src>

<mosaic_0001>
module attributes {stable_mosaic.version = 11 : i64} {
  func.func @_cross_attn_kernel(%arg0: i32, %arg1: i32, %arg2: memref<1x16x32xf32, #tpu.memory_space<vmem>>, %arg3: memref<1x16x32xf32, #tpu.memory_space<vmem>>, %arg4: memref<1x16x32xf32, #tpu.memory_space<vmem>>, %arg5: memref<1x16x16xf32, #tpu.memory_space<vmem>>, %arg6: memref<1x16x32xf32, #tpu.memory_space<vmem>>, %arg7: memref<16x32xf32, #tpu.memory_space<vmem>>) attributes {dimension_semantics = [#tpu.dimension_semantics<parallel>, #tpu.dimension_semantics<parallel>], iteration_bounds = array<i64: 2, 1>, scalar_prefetch = 0 : i64, scratch_operands = 1 : i64, tpu.core_type = #tpu.core_type<tc>, window_params = [{transform_indices = @transform_0, window_bounds = array<i64: 1, 16, 32>}, {transform_indices = @transform_1, window_bounds = array<i64: 1, 16, 32>}, {transform_indices = @transform_2, window_bounds = array<i64: 1, 16, 32>}, {transform_indices = @transform_3, window_bounds = array<i64: 1, 16, 16>}, {transform_indices = @transform_4, window_bounds = array<i64: 1, 16, 32>}]} {
    %c0 = arith.constant 0 : index
    %c0_0 = arith.constant 0 : index
    %c0_1 = arith.constant 0 : index
    %0 = vector.load %arg2[%c0, %c0_0, %c0_1] : memref<1x16x32xf32, #tpu.memory_space<vmem>>, vector<1x16x32xf32>
    %1 = vector.shape_cast %0 : vector<1x16x32xf32> to vector<16x32xf32>
    %cst = arith.constant 0.353553385 : f32
    %2 = vector.broadcast %cst : f32 to vector<16x32xf32>
    %3 = arith.mulf %1, %2 : vector<16x32xf32>
    %4 = vector.extract_strided_slice %3 {offsets = [0, 0], sizes = [16, 8], strides = [1, 1]} : vector<16x32xf32> to vector<16x8xf32>
    %cst_2 = arith.constant 0xFF800000 : f32
    %5 = vector.broadcast %cst_2 : f32 to vector<16x1xf32>
    %cst_3 = arith.constant 0.000000e+00 : f32
    %6 = vector.broadcast %cst_3 : f32 to vector<16x1xf32>
    %cst_4 = arith.constant 0.000000e+00 : f32
    %7 = vector.broadcast %cst_4 : f32 to vector<16x8xf32>
    %c0_5 = arith.constant 0 : index
    %c0_6 = arith.constant 0 : index
    %c0_7 = arith.constant 0 : index
    %8 = vector.load %arg3[%c0_5, %c0_6, %c0_7] : memref<1x16x32xf32, #tpu.memory_space<vmem>>, vector<1x16x8xf32>
    %9 = vector.shape_cast %8 : vector<1x16x8xf32> to vector<16x8xf32>
    %c0_8 = arith.constant 0 : index
    %c0_9 = arith.constant 0 : index
    %c0_10 = arith.constant 0 : index
    %10 = vector.load %arg4[%c0_8, %c0_9, %c0_10] : memref<1x16x32xf32, #tpu.memory_space<vmem>>, vector<1x16x8xf32>
    %11 = vector.shape_cast %10 : vector<1x16x8xf32> to vector<16x8xf32>
    %cst_11 = arith.constant dense<0.000000e+00> : vector<16x16xf32>
    %12 = tpu.matmul %4, %9, %cst_11 {dimension_numbers = #tpu.dot_dimension_numbers<[1], [1], [0], [0], [0, 0, 1, 0], [], []>} : vector<16x8xf32>, vector<16x8xf32>, vector<16x16xf32> -> vector<16x16xf32>
    %cst_12 = arith.constant dense<0xFF800000> : vector<16xf32>
    %13 = vector.multi_reduction <maximumf>, %12, %cst_12 [1] : vector<16x16xf32> to vector<16xf32>
    %14 = vector.shape_cast %13 : vector<16xf32> to vector<16x1xf32>
    %15 = arith.maximumf %5, %14 : vector<16x1xf32>
    %16 = arith.subf %5, %15 : vector<16x1xf32>
    %17 = math.exp %16 : vector<16x1xf32>
    %18 = vector.broadcast %15 : vector<16x1xf32> to vector<16x16xf32>
    %19 = arith.subf %12, %18 : vector<16x16xf32>
    %20 = math.exp %19 : vector<16x16xf32>
    %21 = arith.mulf %17, %6 : vector<16x1xf32>
    %cst_13 = arith.constant dense<0.000000e+00> : vector<16xf32>
    %22 = vector.multi_reduction <add>, %20, %cst_13 [1] : vector<16x16xf32> to vector<16xf32>
    %23 = vector.shape_cast %22 : vector<16xf32> to vector<16x1xf32>
    %24 = arith.addf %21, %23 : vector<16x1xf32>
    %c0_14 = arith.constant 0 : index
    %c0_15 = arith.constant 0 : index
    %c0_16 = arith.constant 0 : index
    %25 = vector.load %arg5[%c0_14, %c0_15, %c0_16] : memref<1x16x16xf32, #tpu.memory_space<vmem>>, vector<1x16x16xf32>
    %26 = vector.shape_cast %25 : vector<1x16x16xf32> to vector<16x16xf32>
    %27 = arith.mulf %20, %26 : vector<16x16xf32>
    %28 = vector.broadcast %17 : vector<16x1xf32> to vector<16x8xf32>
    %29 = arith.mulf %28, %7 : vector<16x8xf32>
    %cst_17 = arith.constant dense<0.000000e+00> : vector<16x8xf32>
    %30 = tpu.matmul %27, %11, %cst_17 {dimension_numbers = #tpu.dot_dimension_numbers<[1], [0], [0], [1], [0, 0, 1, 1], [], []>} : vector<16x16xf32>, vector<16x8xf32>, vector<16x8xf32> -> vector<16x8xf32>
    %31 = arith.addf %29, %30 : vector<16x8xf32>
    %cst_18 = arith.constant 1.000000e+00 : f32
    %32 = vector.broadcast %cst_18 : f32 to vector<16x1xf32>
    %33 = arith.divf %32, %24 : vector<16x1xf32>
    %34 = vector.broadcast %33 : vector<16x1xf32> to vector<16x8xf32>
    %35 = arith.mulf %31, %34 : vector<16x8xf32>
    %c0_19 = arith.constant 0 : index
    %c0_20 = arith.constant 0 : index
    %36 = vector.load %arg7[%c0_19, %c0_20] : memref<16x32xf32, #tpu.memory_space<vmem>>, vector<16x8xf32>
    tpu.vector_store %arg7[%c0_19, %c0_20], %35 {strides = array<i32>} : memref<16x32xf32, #tpu.memory_space<vmem>>, vector<16x8xf32>,
    %37 = vector.extract_strided_slice %3 {offsets = [0, 8], sizes = [16, 8], strides = [1, 1]} : vector<16x32xf32> to vector<16x8xf32>
    %cst_21 = arith.constant 0xFF800000 : f32
    %38 = vector.broadcast %cst_21 : f32 to vector<16x1xf32>
    %cst_22 = arith.constant 0.000000e+00 : f32
    %39 = vector.broadcast %cst_22 : f32 to vector<16x1xf32>
    %cst_23 = arith.constant 0.000000e+00 : f32
    %40 = vector.broadcast %cst_23 : f32 to vector<16x8xf32>
    %c0_24 = arith.constant 0 : index
    %c0_25 = arith.constant 0 : index
    %c8 = arith.constant 8 : index
    %41 = vector.load %arg3[%c0_24, %c0_25, %c8] : memref<1x16x32xf32, #tpu.memory_space<vmem>>, vector<1x16x8xf32>
    %42 = vector.shape_cast %41 : vector<1x16x8xf32> to vector<16x8xf32>
    %c0_26 = arith.constant 0 : index
    %c0_27 = arith.constant 0 : index
    %c8_28 = arith.constant 8 : index
    %43 = vector.load %arg4[%c0_26, %c0_27, %c8_28] : memref<1x16x32xf32, #tpu.memory_space<vmem>>, vector<1x16x8xf32>
    %44 = vector.shape_cast %43 : vector<1x16x8xf32> to vector<16x8xf32>
    %cst_29 = arith.constant dense<0.000000e+00> : vector<16x16xf32>
    %45 = tpu.matmul %37, %42, %cst_29 {dimension_numbers = #tpu.dot_dimension_numbers<[1], [1], [0], [0], [0, 0, 1, 0], [], []>} : vector<16x8xf32>, vector<16x8xf32>, vector<16x16xf32> -> vector<16x16xf32>
    %cst_30 = arith.constant dense<0xFF800000> : vector<16xf32>
    %46 = vector.multi_reduction <maximumf>, %45, %cst_30 [1] : vector<16x16xf32> to vector<16xf32>
    %47 = vector.shape_cast %46 : vector<16xf32> to vector<16x1xf32>
    %48 = arith.maximumf %38, %47 : vector<16x1xf32>
    %49 = arith.subf %38, %48 : vector<16x1xf32>
    %50 = math.exp %49 : vector<16x1xf32>
    %51 = vector.broadcast %48 : vector<16x1xf32> to vector<16x16xf32>
    %52 = arith.subf %45, %51 : vector<16x16xf32>
    %53 = math.exp %52 : vector<16x16xf32>
    %54 = arith.mulf %50, %39 : vector<16x1xf32>
    %cst_31 = arith.constant dense<0.000000e+00> : vector<16xf32>
    %55 = vector.multi_reduction <add>, %53, %cst_31 [1] : vector<16x16xf32> to vector<16xf32>
    %56 = vector.shape_cast %55 : vector<16xf32> to vector<16x1xf32>
    %57 = arith.addf %54, %56 : vector<16x1xf32>
    %c0_32 = arith.constant 0 : index
    %c0_33 = arith.constant 0 : index
    %c0_34 = arith.constant 0 : index
    %58 = vector.load %arg5[%c0_32, %c0_33, %c0_34] : memref<1x16x16xf32, #tpu.memory_space<vmem>>, vector<1x16x16xf32>
    %59 = vector.shape_cast %58 : vector<1x16x16xf32> to vector<16x16xf32>
    %60 = arith.mulf %53, %59 : vector<16x16xf32>
    %61 = vector.broadcast %50 : vector<16x1xf32> to vector<16x8xf32>
    %62 = arith.mulf %61, %40 : vector<16x8xf32>
    %cst_35 = arith.constant dense<0.000000e+00> : vector<16x8xf32>
    %63 = tpu.matmul %60, %44, %cst_35 {dimension_numbers = #tpu.dot_dimension_numbers<[1], [0], [0], [1], [0, 0, 1, 1], [], []>} : vector<16x16xf32>, vector<16x8xf32>, vector<16x8xf32> -> vector<16x8xf32>
    %64 = arith.addf %62, %63 : vector<16x8xf32>
    %cst_36 = arith.constant 1.000000e+00 : f32
    %65 = vector.broadcast %cst_36 : f32 to vector<16x1xf32>
    %66 = arith.divf %65, %57 : vector<16x1xf32>
    %67 = vector.broadcast %66 : vector<16x1xf32> to vector<16x8xf32>
    %68 = arith.mulf %64, %67 : vector<16x8xf32>
    %c0_37 = arith.constant 0 : index
    %c8_38 = arith.constant 8 : index
    %69 = vector.load %arg7[%c0_37, %c8_38] : memref<16x32xf32, #tpu.memory_space<vmem>>, vector<16x8xf32>
    tpu.vector_store %arg7[%c0_37, %c8_38], %68 {strides = array<i32>} : memref<16x32xf32, #tpu.memory_space<vmem>>, vector<16x8xf32>,
    %70 = vector.extract_strided_slice %3 {offsets = [0, 16], sizes = [16, 8], strides = [1, 1]} : vector<16x32xf32> to vector<16x8xf32>
    %cst_39 = arith.constant 0xFF800000 : f32
    %71 = vector.broadcast %cst_39 : f32 to vector<16x1xf32>
    %cst_40 = arith.constant 0.000000e+00 : f32
    %72 = vector.broadcast %cst_40 : f32 to vector<16x1xf32>
    %cst_41 = arith.constant 0.000000e+00 : f32
    %73 = vector.broadcast %cst_41 : f32 to vector<16x8xf32>
    %c0_42 = arith.constant 0 : index
    %c0_43 = arith.constant 0 : index
    %c16 = arith.constant 16 : index
    %74 = vector.load %arg3[%c0_42, %c0_43, %c16] : memref<1x16x32xf32, #tpu.memory_space<vmem>>, vector<1x16x8xf32>
    %75 = vector.shape_cast %74 : vector<1x16x8xf32> to vector<16x8xf32>
    %c0_44 = arith.constant 0 : index
    %c0_45 = arith.constant 0 : index
    %c16_46 = arith.constant 16 : index
    %76 = vector.load %arg4[%c0_44, %c0_45, %c16_46] : memref<1x16x32xf32, #tpu.memory_space<vmem>>, vector<1x16x8xf32>
    %77 = vector.shape_cast %76 : vector<1x16x8xf32> to vector<16x8xf32>
    %cst_47 = arith.constant dense<0.000000e+00> : vector<16x16xf32>
    %78 = tpu.matmul %70, %75, %cst_47 {dimension_numbers = #tpu.dot_dimension_numbers<[1], [1], [0], [0], [0, 0, 1, 0], [], []>} : vector<16x8xf32>, vector<16x8xf32>, vector<16x16xf32> -> vector<16x16xf32>
    %cst_48 = arith.constant dense<0xFF800000> : vector<16xf32>
    %79 = vector.multi_reduction <maximumf>, %78, %cst_48 [1] : vector<16x16xf32> to vector<16xf32>
    %80 = vector.shape_cast %79 : vector<16xf32> to vector<16x1xf32>
    %81 = arith.maximumf %71, %80 : vector<16x1xf32>
    %82 = arith.subf %71, %81 : vector<16x1xf32>
    %83 = math.exp %82 : vector<16x1xf32>
    %84 = vector.broadcast %81 : vector<16x1xf32> to vector<16x16xf32>
    %85 = arith.subf %78, %84 : vector<16x16xf32>
    %86 = math.exp %85 : vector<16x16xf32>
    %87 = arith.mulf %83, %72 : vector<16x1xf32>
    %cst_49 = arith.constant dense<0.000000e+00> : vector<16xf32>
    %88 = vector.multi_reduction <add>, %86, %cst_49 [1] : vector<16x16xf32> to vector<16xf32>
    %89 = vector.shape_cast %88 : vector<16xf32> to vector<16x1xf32>
    %90 = arith.addf %87, %89 : vector<16x1xf32>
    %c0_50 = arith.constant 0 : index
    %c0_51 = arith.constant 0 : index
    %c0_52 = arith.constant 0 : index
    %91 = vector.load %arg5[%c0_50, %c0_51, %c0_52] : memref<1x16x16xf32, #tpu.memory_space<vmem>>, vector<1x16x16xf32>
    %92 = vector.shape_cast %91 : vector<1x16x16xf32> to vector<16x16xf32>
    %93 = arith.mulf %86, %92 : vector<16x16xf32>
    %94 = vector.broadcast %83 : vector<16x1xf32> to vector<16x8xf32>
    %95 = arith.mulf %94, %73 : vector<16x8xf32>
    %cst_53 = arith.constant dense<0.000000e+00> : vector<16x8xf32>
    %96 = tpu.matmul %93, %77, %cst_53 {dimension_numbers = #tpu.dot_dimension_numbers<[1], [0], [0], [1], [0, 0, 1, 1], [], []>} : vector<16x16xf32>, vector<16x8xf32>, vector<16x8xf32> -> vector<16x8xf32>
    %97 = arith.addf %95, %96 : vector<16x8xf32>
    %cst_54 = arith.constant 1.000000e+00 : f32
    %98 = vector.broadcast %cst_54 : f32 to vector<16x1xf32>
    %99 = arith.divf %98, %90 : vector<16x1xf32>
    %100 = vector.broadcast %99 : vector<16x1xf32> to vector<16x8xf32>
    %101 = arith.mulf %97, %100 : vector<16x8xf32>
    %c0_55 = arith.constant 0 : index
    %c16_56 = arith.constant 16 : index
    %102 = vector.load %arg7[%c0_55, %c16_56] : memref<16x32xf32, #tpu.memory_space<vmem>>, vector<16x8xf32>
    tpu.vector_store %arg7[%c0_55, %c16_56], %101 {strides = array<i32>} : memref<16x32xf32, #tpu.memory_space<vmem>>, vector<16x8xf32>,
    %103 = vector.extract_strided_slice %3 {offsets = [0, 24], sizes = [16, 8], strides = [1, 1]} : vector<16x32xf32> to vector<16x8xf32>
    %cst_57 = arith.constant 0xFF800000 : f32
    %104 = vector.broadcast %cst_57 : f32 to vector<16x1xf32>
    %cst_58 = arith.constant 0.000000e+00 : f32
    %105 = vector.broadcast %cst_58 : f32 to vector<16x1xf32>
    %cst_59 = arith.constant 0.000000e+00 : f32
    %106 = vector.broadcast %cst_59 : f32 to vector<16x8xf32>
    %c0_60 = arith.constant 0 : index
    %c0_61 = arith.constant 0 : index
    %c24 = arith.constant 24 : index
    %107 = vector.load %arg3[%c0_60, %c0_61, %c24] : memref<1x16x32xf32, #tpu.memory_space<vmem>>, vector<1x16x8xf32>
    %108 = vector.shape_cast %107 : vector<1x16x8xf32> to vector<16x8xf32>
    %c0_62 = arith.constant 0 : index
    %c0_63 = arith.constant 0 : index
    %c24_64 = arith.constant 24 : index
    %109 = vector.load %arg4[%c0_62, %c0_63, %c24_64] : memref<1x16x32xf32, #tpu.memory_space<vmem>>, vector<1x16x8xf32>
    %110 = vector.shape_cast %109 : vector<1x16x8xf32> to vector<16x8xf32>
    %cst_65 = arith.constant dense<0.000000e+00> : vector<16x16xf32>
    %111 = tpu.matmul %103, %108, %cst_65 {dimension_numbers = #tpu.dot_dimension_numbers<[1], [1], [0], [0], [0, 0, 1, 0], [], []>} : vector<16x8xf32>, vector<16x8xf32>, vector<16x16xf32> -> vector<16x16xf32>
    %cst_66 = arith.constant dense<0xFF800000> : vector<16xf32>
    %112 = vector.multi_reduction <maximumf>, %111, %cst_66 [1] : vector<16x16xf32> to vector<16xf32>
    %113 = vector.shape_cast %112 : vector<16xf32> to vector<16x1xf32>
    %114 = arith.maximumf %104, %113 : vector<16x1xf32>
    %115 = arith.subf %104, %114 : vector<16x1xf32>
    %116 = math.exp %115 : vector<16x1xf32>
    %117 = vector.broadcast %114 : vector<16x1xf32> to vector<16x16xf32>
    %118 = arith.subf %111, %117 : vector<16x16xf32>
    %119 = math.exp %118 : vector<16x16xf32>
    %120 = arith.mulf %116, %105 : vector<16x1xf32>
    %cst_67 = arith.constant dense<0.000000e+00> : vector<16xf32>
    %121 = vector.multi_reduction <add>, %119, %cst_67 [1] : vector<16x16xf32> to vector<16xf32>
    %122 = vector.shape_cast %121 : vector<16xf32> to vector<16x1xf32>
    %123 = arith.addf %120, %122 : vector<16x1xf32>
    %c0_68 = arith.constant 0 : index
    %c0_69 = arith.constant 0 : index
    %c0_70 = arith.constant 0 : index
    %124 = vector.load %arg5[%c0_68, %c0_69, %c0_70] : memref<1x16x16xf32, #tpu.memory_space<vmem>>, vector<1x16x16xf32>
    %125 = vector.shape_cast %124 : vector<1x16x16xf32> to vector<16x16xf32>
    %126 = arith.mulf %119, %125 : vector<16x16xf32>
    %127 = vector.broadcast %116 : vector<16x1xf32> to vector<16x8xf32>
    %128 = arith.mulf %127, %106 : vector<16x8xf32>
    %cst_71 = arith.constant dense<0.000000e+00> : vector<16x8xf32>
    %129 = tpu.matmul %126, %110, %cst_71 {dimension_numbers = #tpu.dot_dimension_numbers<[1], [0], [0], [1], [0, 0, 1, 1], [], []>} : vector<16x16xf32>, vector<16x8xf32>, vector<16x8xf32> -> vector<16x8xf32>
    %130 = arith.addf %128, %129 : vector<16x8xf32>
    %cst_72 = arith.constant 1.000000e+00 : f32
    %131 = vector.broadcast %cst_72 : f32 to vector<16x1xf32>
    %132 = arith.divf %131, %123 : vector<16x1xf32>
    %133 = vector.broadcast %132 : vector<16x1xf32> to vector<16x8xf32>
    %134 = arith.mulf %130, %133 : vector<16x8xf32>
    %c0_73 = arith.constant 0 : index
    %c24_74 = arith.constant 24 : index
    %135 = vector.load %arg7[%c0_73, %c24_74] : memref<16x32xf32, #tpu.memory_space<vmem>>, vector<16x8xf32>
    tpu.vector_store %arg7[%c0_73, %c24_74], %134 {strides = array<i32>} : memref<16x32xf32, #tpu.memory_space<vmem>>, vector<16x8xf32>,
    %c0_75 = arith.constant 0 : index
    %c0_76 = arith.constant 0 : index
    %136 = vector.load %arg7[%c0_75, %c0_76] : memref<16x32xf32, #tpu.memory_space<vmem>>, vector<16x32xf32>
    %c0_77 = arith.constant 0 : index
    %c0_78 = arith.constant 0 : index
    %c0_79 = arith.constant 0 : index
    %137 = vector.load %arg6[%c0_77, %c0_78, %c0_79] : memref<1x16x32xf32, #tpu.memory_space<vmem>>, vector<1x16x32xf32>
    %138 = vector.shape_cast %137 : vector<1x16x32xf32> to vector<16x32xf32>
    %139 = vector.shape_cast %136 : vector<16x32xf32> to vector<1x16x32xf32>
    tpu.vector_store %arg6[%c0_77, %c0_78, %c0_79], %139 {strides = array<i32>} : memref<1x16x32xf32, #tpu.memory_space<vmem>>, vector<1x16x32xf32>,
    return
  }
  func.func @transform_0(%arg0: i32, %arg1: i32) -> (i32, i32, i32) {
    %c0_i32 = arith.constant 0 : i32
    %c0_i32_0 = arith.constant 0 : i32
    return %arg0, %arg1, %c0_i32 : i32, i32, i32
  }
  func.func @transform_1(%arg0: i32, %arg1: i32) -> (i32, i32, i32) {
    %c0_i32 = arith.constant 0 : i32
    %c0_i32_0 = arith.constant 0 : i32
    %c0_i32_1 = arith.constant 0 : i32
    return %arg0, %c0_i32, %c0_i32_0 : i32, i32, i32
  }
  func.func @transform_2(%arg0: i32, %arg1: i32) -> (i32, i32, i32) {
    %c0_i32 = arith.constant 0 : i32
    %c0_i32_0 = arith.constant 0 : i32
    %c0_i32_1 = arith.constant 0 : i32
    return %arg0, %c0_i32, %c0_i32_0 : i32, i32, i32
  }
  func.func @transform_3(%arg0: i32, %arg1: i32) -> (i32, i32, i32) {
    %c0_i32 = arith.constant 0 : i32
    %c0_i32_0 = arith.constant 0 : i32
    %c0_i32_1 = arith.constant 0 : i32
    return %c0_i32, %arg1, %c0_i32_0 : i32, i32, i32
  }
  func.func @transform_4(%arg0: i32, %arg1: i32) -> (i32, i32, i32) {
    %c0_i32 = arith.constant 0 : i32
    %c0_i32_0 = arith.constant 0 : i32
    return %arg0, %arg1, %c0_i32 : i32, i32, i32
  }
}

</mosaic_0001>

<llo_original>
// kernel: tpu_custom_call.1
$region0: #{tpu_custom_call.1}
  #allocation0 [shape = 'u32[]', space=smem, size = 0x4, offset = 0x4, fixed_abs, tag = 'smem constant byte address 0x4 - core index']
  #allocation1 [shape = 'u32[144,128]{1,0:T(1,128)}', space=vmem, size = 0x12000, scoped, tag = 'internal scratch']
  #allocation2 [shape = 'f32[16,32]{1,0:T(8,128)}', space=vmem, size = 0x2000, scoped, tag = 'scratch operand']
  %s0 = inlined_call_operand.hbm [shape: f32[2,16,32], index: 0, kind: input, shape index: {}]
  %s1 = inlined_call_operand.hbm [shape: f32[2,16,32], index: 1, kind: input, shape index: {}]
  %s2 = inlined_call_operand.hbm [shape: f32[2,16,32], index: 2, kind: input, shape index: {}]
  %s3 = inlined_call_operand.hbm [shape: f32[1,16,16], index: 3, kind: input, shape index: {}]
  %s4 = inlined_call_operand.hbm [shape: f32[2,16,32], index: 4, kind: output, shape index: {}]
  %s5 = sld [smem:[#allocation0]]
  $region65: #{tpu_custom_call.1} parent=0
    _
  %s7 = ssub.s32 1, %s5
  %s8 = scalar_select 0, %s7, %s5
  $region1: #{tpu_custom_call.1} parent=0
    #allocation3 [shape = 'u8[16384]{0}', space=vmem, size = 0x4000, scoped, tag = 'input window, operand 0']
    #allocation4 [shape = 's32[2]{0}', space=sflag, size = 0x8, scoped, tag = 'scoped memory for tpu_custom_call.1']
    #allocation5 [shape = 's32[2]{0}', space=sflag, size = 0x8, scoped, tag = 'scoped memory for tpu_custom_call.1']
    #allocation6 [shape = 'u8[16384]{0}', space=vmem, size = 0x4000, scoped, tag = 'input window, operand 1']
    #allocation7 [shape = 's32[2]{0}', space=sflag, size = 0x8, scoped, tag = 'scoped memory for tpu_custom_call.1']
    #allocation8 [shape = 'u8[16384]{0}', space=vmem, size = 0x4000, scoped, tag = 'input window, operand 2']
    #allocation9 [shape = 'u8[8192]{0}', space=vmem, size = 0x2000, scoped, tag = 'input window, operand 3, single buffered']
    #allocation10 [shape = 's32[1]{0}', space=sflag, size = 0x4, scoped, tag = 'scoped memory for tpu_custom_call.1']
    #allocation11 [shape = 'u8[16384]{0}', space=vmem, size = 0x4000, scoped, tag = 'output window, operand 0']
    %9 = vsyncpa [#allocation4], 0
    %s10 = scalar_lea.sflag [#allocation4], 1
    %11 = vsyncpa %s10, 0
    %12 = vsyncpa [#allocation7], 0
    %s13 = scalar_lea.sflag [#allocation7], 1
    %14 = vsyncpa %s13, 0
    %15 = vsyncpa [#allocation10], 0
    %16 = vsyncpa [#allocation5], 0
    %s17 = scalar_lea.sflag [#allocation5], 1
    %18 = vsyncpa %s17, 0
    loop: start=0, step=1, limit=4
    $region2: #{tpu_custom_call.1} parent=1 // loop_pre_header
      _
    $region3: #{tpu_custom_call.1} parent=1 // loop_header
      %s20 = sphi 0, %s24
      %p21 = scmp.ge.s32.totalorder %s20, 4
      %s27 = sphi 0, %s39
      %s28 = sphi 0, %s35
      %s29 = sphi 0, %s27
      %s30 = sphi 0, %s28
      %s31 = sphi 0, %s29
      %s32 = sphi 0, %s30
      %s44 = sphi 0, %s46
      %s47 = sphi 0, %s44
      %s48 = sphi 0, %s47
      %s64 = sphi 0, %s48
      %s70 = sphi 0, %s72
      %s73 = sphi 0, %s70
      %s74 = sphi 0, %s73
      %s90 = sphi 0, %s74
      %s96 = sphi 0, %s98
      %s99 = sphi 0, %s96
      %s100 = sphi 0, %s99
      %s116 = sphi 0, %s100
      %s122 = sphi 0, %s124
      %s125 = sphi 0, %s122
      %s126 = sphi 0, %s125
      %s142 = sphi 0, %s126
      %s150 = sphi 0, %s152
      %s153 = sphi 0, %s150
      %s154 = sphi 0, %s153
      %s170 = sphi 0, %s154
    $region4: #{tpu_custom_call.1} parent=1 // loop_header_branch
      %23 = sbr.rel (%p21) target = $region8
    $region5: #{tpu_custom_call.1} parent=1 // loop_body
      %s25 = ssub.s32 %s20, 1
      %s26 = ssub.s32 %s20, 2
      %s33 = sadd.s32 1, %s28
      %p34 = scmp.ge.s32.totalorder %s33, 1
      %s35 = scalar_select %p34, 0, %s33
      %s36 = sadd.s32 1, %s27
      %s37 = scalar_select %p34, %s36, %s27
      %p38 = scmp.ge.s32.totalorder %s37, 2
      %s39 = scalar_select %p38, 0, %s37
      %s40 = ssub.s32 %s27, %s39
      %s41 = ssub.s32 %s28, %s35
      %s42 = sor.u32 %s40, %s41
      %p43 = scmp.eq.s32.totalorder %s42, 0
      %s45 = sadd.s32 %s44, 1
      %s46 = scalar_select %p43, %s44, %s45
      %p49 = pneg %p43
      %p50 = scmp.eq.s32.totalorder %s20, 1
      %p51 = por %p49, %p50
      %p52 = scmp.ne.s32.totalorder %s44, %s47
      %p53 = scmp.eq.s32.totalorder %s20, 0
      %p54 = por %p52, %p53
      %p55 = scmp.ne.s32.totalorder %s44, %s47
      %p56 = scmp.eq.s32.totalorder %s25, 1
      %p57 = por %p55, %p56
      %p58 = scmp.ne.s32.totalorder %s47, %s48
      %p59 = scmp.eq.s32.totalorder %s25, 0
      %p60 = por %p58, %p59
      %p61 = scmp.ne.s32.totalorder %s47, %s48
      %p62 = scmp.eq.s32.totalorder %s26, 1
      %p63 = por %p61, %p62
      %p65 = scmp.ne.s32.totalorder %s48, %s64
      %p66 = scmp.eq.s32.totalorder %s26, 0
      %p67 = por %p65, %p66
      %s68 = ssub.s32 %s27, %s39
      %p69 = scmp.eq.s32.totalorder %s68, 0
      %s71 = sadd.s32 %s70, 1
      %s72 = scalar_select %p69, %s70, %s71
      %p75 = pneg %p69
      %p76 = scmp.eq.s32.totalorder %s20, 1
      %p77 = por %p75, %p76
      %p78 = scmp.ne.s32.totalorder %s70, %s73
      %p79 = scmp.eq.s32.totalorder %s20, 0
      %p80 = por %p78, %p79
      %p81 = scmp.ne.s32.totalorder %s70, %s73
      %p82 = scmp.eq.s32.totalorder %s25, 1
      %p83 = por %p81, %p82
      %p84 = scmp.ne.s32.totalorder %s73, %s74
      %p85 = scmp.eq.s32.totalorder %s25, 0
      %p86 = por %p84, %p85
      %p87 = scmp.ne.s32.totalorder %s73, %s74
      %p88 = scmp.eq.s32.totalorder %s26, 1
      %p89 = por %p87, %p88
      %p91 = scmp.ne.s32.totalorder %s74, %s90
      %p92 = scmp.eq.s32.totalorder %s26, 0
      %p93 = por %p91, %p92
      %s94 = ssub.s32 %s27, %s39
      %p95 = scmp.eq.s32.totalorder %s94, 0
      %s97 = sadd.s32 %s96, 1
      %s98 = scalar_select %p95, %s96, %s97
      %p101 = pneg %p95
      %p102 = scmp.eq.s32.totalorder %s20, 1
      %p103 = por %p101, %p102
      %p104 = scmp.ne.s32.totalorder %s96, %s99
      %p105 = scmp.eq.s32.totalorder %s20, 0
      %p106 = por %p104, %p105
      %p107 = scmp.ne.s32.totalorder %s96, %s99
      %p108 = scmp.eq.s32.totalorder %s25, 1
      %p109 = por %p107, %p108
      %p110 = scmp.ne.s32.totalorder %s99, %s100
      %p111 = scmp.eq.s32.totalorder %s25, 0
      %p112 = por %p110, %p111
      %p113 = scmp.ne.s32.totalorder %s99, %s100
      %p114 = scmp.eq.s32.totalorder %s26, 1
      %p115 = por %p113, %p114
      %p117 = scmp.ne.s32.totalorder %s100, %s116
      %p118 = scmp.eq.s32.totalorder %s26, 0
      %p119 = por %p117, %p118
      %s120 = ssub.s32 %s28, %s35
      %p121 = scmp.eq.s32.totalorder %s120, 0
      %s123 = sadd.s32 %s122, 1
      %s124 = scalar_select %p121, %s122, %s123
      %p127 = pneg %p121
      %p128 = scmp.eq.s32.totalorder %s20, 1
      %p129 = por %p127, %p128
      %p130 = scmp.ne.s32.totalorder %s122, %s125
      %p131 = scmp.eq.s32.totalorder %s20, 0
      %p132 = por %p130, %p131
      %p133 = scmp.ne.s32.totalorder %s122, %s125
      %p134 = scmp.eq.s32.totalorder %s25, 1
      %p135 = por %p133, %p134
      %p136 = scmp.ne.s32.totalorder %s125, %s126
      %p137 = scmp.eq.s32.totalorder %s25, 0
      %p138 = por %p136, %p137
      %p139 = scmp.ne.s32.totalorder %s125, %s126
      %p140 = scmp.eq.s32.totalorder %s26, 1
      %p141 = por %p139, %p140
      %p143 = scmp.ne.s32.totalorder %s126, %s142
      %p144 = scmp.eq.s32.totalorder %s26, 0
      %p145 = por %p143, %p144
      %s146 = ssub.s32 %s27, %s39
      %s147 = ssub.s32 %s28, %s35
      %s148 = sor.u32 %s146, %s147
      %p149 = scmp.eq.s32.totalorder %s148, 0
      %s151 = sadd.s32 %s150, 1
      %s152 = scalar_select %p149, %s150, %s151
      %p155 = pneg %p149
      %p156 = scmp.eq.s32.totalorder %s20, 1
      %p157 = por %p155, %p156
      %p158 = scmp.ne.s32.totalorder %s150, %s153
      %p159 = scmp.eq.s32.totalorder %s20, 0
      %p160 = por %p158, %p159
      %p161 = scmp.ne.s32.totalorder %s150, %s153
      %p162 = scmp.eq.s32.totalorder %s25, 1
      %p163 = por %p161, %p162
      %p164 = scmp.ne.s32.totalorder %s153, %s154
      %p165 = scmp.eq.s32.totalorder %s25, 0
      %p166 = por %p164, %p165
      %p167 = scmp.ne.s32.totalorder %s153, %s154
      %p168 = scmp.eq.s32.totalorder %s26, 1
      %p169 = por %p167, %p168
      %p171 = scmp.ne.s32.totalorder %s154, %s170
      %p172 = scmp.eq.s32.totalorder %s26, 0
      %p173 = por %p171, %p172
      %p174 = scmp.le.s32.totalorder 1, %s20
      %p175 = scmp.lt.s32.totalorder %s20, 3
      %p176 = pnand %p174, %p175
      %p177 = pneg %p176
      // Predicated region
      $region9: #{tpu_custom_call.1} parent=5 // pred_check
        _
      $region10: #{tpu_custom_call.1} parent=5 // pred_check_branch
        %179 = sbr.rel (%p176) target = $region12
      $region11: #{tpu_custom_call.1} parent=5 // pred_region
        %s180 = ssub.s32 %s20, 1
        // Predicated region
        $region13: #{tpu_custom_call.1} parent=11 // pred_check
          %p181 = pneg %p138
        $region14: #{tpu_custom_call.1} parent=11 // pred_check_branch
          %183 = sbr.rel (%p181) target = $region16
        $region15: #{tpu_custom_call.1} parent=11 // pred_region
          %s184 = smul.u32 2, %s30
          %s186 = ssub.s32 256, 256
          %187 = vsyncadd [#allocation10], %s186
          %s188 = smul.addr %s184, 128
          %s189 = scalar_lea.hbm %s3, %s188
          %s190 = sshll.u32 [#allocation9], 4
          %s191 = int_to_ptr.vmem [resolvable:$true] %s190
          %196 = dma.hbm_to_vmem [thread:$0]  %s189, 256, %s191, [#allocation10], 128, 128, 8
        $region16: #{tpu_custom_call.1} parent=11 // pred_fallthru
          _
      $region12: #{tpu_custom_call.1} parent=5 // pred_fallthru
        _
      %p197 = scmp.lt.s32.totalorder %s20, 2
      // Predicated region
      $region17: #{tpu_custom_call.1} parent=5 // pred_check
        %p198 = pneg %p197
      $region18: #{tpu_custom_call.1} parent=5 // pred_check_branch
        %200 = sbr.rel (%p198) target = $region20
      $region19: #{tpu_custom_call.1} parent=5 // pred_region
        // Predicated region
        $region21: #{tpu_custom_call.1} parent=19 // pred_check
          %p201 = pneg %p54
        $region22: #{tpu_custom_call.1} parent=19 // pred_check_branch
          %203 = sbr.rel (%p201) target = $region24
        $region23: #{tpu_custom_call.1} parent=19 // pred_region
          %s204 = sand.u32 %s44, 1
          %s205 = scalar_lea.sflag [#allocation4], %s204
          %s206 = sand.u32 %s44, 1
          %s207 = smul.addr %s206, 16
          %s208 = scalar_lea.vmem [#allocation3], %s207
          %s209 = smul.u32 2, %s28
          %s211 = ssub.s32 256, 256
          %212 = vsyncadd %s205, %s211
          %s213 = smul.addr %s27, 2
          %s214 = sadd.s32 %s209, %s213
          %s215 = smul.addr %s214, 128
          %s216 = scalar_lea.hbm %s0, %s215
          %s217 = sshll.u32 %s208, 4
          %s218 = int_to_ptr.vmem [resolvable:$true] %s217
          %223 = dma.hbm_to_vmem [thread:$0]  %s216, 256, %s218, %s205, 128, 128, 8
        $region24: #{tpu_custom_call.1} parent=19 // pred_fallthru
          _
        // Predicated region
        $region25: #{tpu_custom_call.1} parent=19 // pred_check
          %p224 = pneg %p80
        $region26: #{tpu_custom_call.1} parent=19 // pred_check_branch
          %226 = sbr.rel (%p224) target = $region28
        $region27: #{tpu_custom_call.1} parent=19 // pred_region
          %s227 = sand.u32 %s20, 1
          %s228 = scalar_lea.sflag [#allocation7], %s227
          %s229 = sand.u32 %s70, 1
          %s230 = smul.addr %s229, 16
          %s231 = scalar_lea.vmem [#allocation6], %s230
          %s233 = ssub.s32 256, 256
          %234 = vsyncadd %s228, %s233
          %s235 = smul.addr %s27, 2
          %s236 = smul.addr %s235, 128
          %s237 = scalar_lea.hbm %s1, %s236
          %s238 = sshll.u32 %s231, 4
          %s239 = int_to_ptr.vmem [resolvable:$true] %s238
          %244 = dma.hbm_to_vmem [thread:$0]  %s237, 256, %s239, %s228, 128, 128, 8
        $region28: #{tpu_custom_call.1} parent=19 // pred_fallthru
          _
        // Predicated region
        $region29: #{tpu_custom_call.1} parent=19 // pred_check
          %p245 = pneg %p106
        $region30: #{tpu_custom_call.1} parent=19 // pred_check_branch
          %247 = sbr.rel (%p245) target = $region32
        $region31: #{tpu_custom_call.1} parent=19 // pred_region
          %s248 = sand.u32 %s20, 1
          %s249 = scalar_lea.sflag [#allocation7], %s248
          %s250 = sand.u32 %s96, 1
          %s251 = smul.addr %s250, 16
          %s252 = scalar_lea.vmem [#allocation8], %s251
          %s254 = ssub.s32 256, 256
          %255 = vsyncadd %s249, %s254
          %s256 = smul.addr %s27, 2
          %s257 = smul.addr %s256, 128
          %s258 = scalar_lea.hbm %s2, %s257
          %s259 = sshll.u32 %s252, 4
          %s260 = int_to_ptr.vmem [resolvable:$true] %s259
          %265 = dma.hbm_to_vmem [thread:$0]  %s258, 256, %s260, %s249, 128, 128, 8
        $region32: #{tpu_custom_call.1} parent=19 // pred_fallthru
          _
      $region20: #{tpu_custom_call.1} parent=5 // pred_fallthru
        _
      %p266 = scmp.le.s32.totalorder 1, %s20
      %p267 = scmp.lt.s32.totalorder %s20, 3
      %p268 = pnand %p266, %p267
      %p269 = pneg %p268
      // Predicated region
      $region33: #{tpu_custom_call.1} parent=5 // pred_check
        _
      $region34: #{tpu_custom_call.1} parent=5 // pred_check_branch
        %271 = sbr.rel (%p268) target = $region36
      $region35: #{tpu_custom_call.1} parent=5 // pred_region
        %s272 = ssub.s32 %s20, 1
        %s273 = sand.u32 %s47, 1
        %s274 = scalar_lea.sflag [#allocation4], %s273
        %s275 = sand.u32 %s47, 1
        %s276 = smul.addr %s275, 16
        %s277 = scalar_lea.vmem [#allocation3], %s276
        // Predicated region
        $region37: #{tpu_custom_call.1} parent=35 // pred_check
          %p278 = pneg %p60
        $region38: #{tpu_custom_call.1} parent=35 // pred_check_branch
          %280 = sbr.rel (%p278) target = $region40
        $region39: #{tpu_custom_call.1} parent=35 // pred_region
          %281 = dma.done %s274, 256
        $region40: #{tpu_custom_call.1} parent=35 // pred_fallthru
          _
        %s282 = sand.u32 %s25, 1
        %s283 = scalar_lea.sflag [#allocation7], %s282
        %s284 = sand.u32 %s73, 1
        %s285 = smul.addr %s284, 16
        %s286 = scalar_lea.vmem [#allocation6], %s285
        // Predicated region
        $region41: #{tpu_custom_call.1} parent=35 // pred_check
          %p287 = pneg %p86
        $region42: #{tpu_custom_call.1} parent=35 // pred_check_branch
          %289 = sbr.rel (%p287) target = $region44
        $region43: #{tpu_custom_call.1} parent=35 // pred_region
          %290 = dma.done %s283, 256
        $region44: #{tpu_custom_call.1} parent=35 // pred_fallthru
          _
        %s291 = sand.u32 %s25, 1
        %s292 = scalar_lea.sflag [#allocation7], %s291
        %s293 = sand.u32 %s99, 1
        %s294 = smul.addr %s293, 16
        %s295 = scalar_lea.vmem [#allocation8], %s294
        // Predicated region
        $region45: #{tpu_custom_call.1} parent=35 // pred_check
          %p296 = pneg %p112
        $region46: #{tpu_custom_call.1} parent=35 // pred_check_branch
          %298 = sbr.rel (%p296) target = $region48
        $region47: #{tpu_custom_call.1} parent=35 // pred_region
          %299 = dma.done %s292, 256
        $region48: #{tpu_custom_call.1} parent=35 // pred_fallthru
          _
        // Predicated region
        $region49: #{tpu_custom_call.1} parent=35 // pred_check
          %p300 = pneg %p138
        $region50: #{tpu_custom_call.1} parent=35 // pred_check_branch
          %302 = sbr.rel (%p300) target = $region52
        $region51: #{tpu_custom_call.1} parent=35 // pred_region
          %303 = dma.done [#allocation10], 256
        $region52: #{tpu_custom_call.1} parent=35 // pred_fallthru
          _
        %s304 = sand.u32 %s47, 1
        %s305 = scalar_lea.sflag [#allocation4], %s304
        %s306 = sand.u32 %s47, 1
        %s307 = smul.addr %s306, 16
        %s308 = scalar_lea.vmem [#allocation3], %s307
        %p309 = pneg %p60
        %p310 = pneg %p57
        %s311 = sand.u32 %s25, 1
        %s312 = scalar_lea.sflag [#allocation7], %s311
        %s313 = sand.u32 %s73, 1
        %s314 = smul.addr %s313, 16
        %s315 = scalar_lea.vmem [#allocation6], %s314
        %p316 = pneg %p86
        %p317 = pneg %p83
        %s318 = sand.u32 %s25, 1
        %s319 = scalar_lea.sflag [#allocation7], %s318
        %s320 = sand.u32 %s99, 1
        %s321 = smul.addr %s320, 16
        %s322 = scalar_lea.vmem [#allocation8], %s321
        %p323 = pneg %p112
        %p324 = pneg %p109
        %p325 = pneg %p138
        %p326 = pneg %p135
        %p327 = pneg %p166
        %p328 = pneg %p163
        %s329 = sand.u32 %s153, 1
        %s330 = scalar_lea.sflag [#allocation5], %s329
        %s331 = sand.u32 %s153, 1
        %s332 = smul.addr %s331, 16
        %s333 = scalar_lea.vmem [#allocation11], %s332
        %s334 = smul.u32 2, %s30
        %s335 = smul.u32 2, %s30
        %s336 = smul.u32 2, %s30
        %v337 = vld [vmem:[%s277] sm:$0xff]
        %v338 = vld [vmem:[%s277 + $0x8] sm:$0xff]
        %v339 = vmul.f32 %v337, 0.35355338
        %v340 = vmul.f32 %v338, 0.35355338
        %v341 = vld [vmem:[%s286] sm:$0xff]
        %v342 = vld [vmem:[%s286 + $0x8] sm:$0xff]
        %v343 = vld [vmem:[%s295] sm:$0xff]
        %v344 = vld [vmem:[%s295 + $0x8] sm:$0xff]
        %vm345 = vcmask 64512
        %v347 = vsel %vm345, %v339, 0
        %v350 = vsel %vm345, %v340, 0
        %v353 = vsel %vm345, %v341, 0
        %v356 = vsel %vm345, %v342, 0
        %358 = vmatprep.subr.mxu0 0.0
        %359 = vmatpush1.xpose.msra.mxu0 %v353
        %360 = vmatprep.subr.mxu0 0.0
        %361 = vmatpush1.xpose.msra.mxu0 %v356
        %362 = vmatprep.subr.mxu0 0.0
        %363 = vmatpush1.xpose.msra.mxu0 0.0
        %364 = vmatprep.subr.mxu0 0.0
        %365 = vmatpush1.xpose.msra.mxu0 0.0
        %366 = vmatprep.subr.mxu0 0.0
        %367 = vmatpush1.xpose.msra.mxu0 0.0
        %368 = vmatprep.subr.mxu0 0.0
        %369 = vmatpush1.xpose.msra.mxu0 0.0
        %370 = vmatprep.subr.mxu0 0.0
        %371 = vmatpush1.xpose.msra.mxu0 0.0
        %372 = vmatprep.subr.mxu0 0.0
        %373 = vmatpush1.xpose.msra.mxu0 0.0
        %374 = vmatprep.subr.mxu0 0.0
        %375 = vmatpush1.xpose.msra.mxu0 0.0
        %376 = vmatprep.subr.mxu0 0.0
        %377 = vmatpush1.xpose.msra.mxu0 0.0
        %378 = vmatprep.subr.mxu0 0.0
        %379 = vmatpush1.xpose.msra.mxu0 0.0
        %380 = vmatprep.subr.mxu0 0.0
        %381 = vmatpush1.xpose.msra.mxu0 0.0
        %382 = vmatprep.subr.mxu0 0.0
        %383 = vmatpush1.xpose.msra.mxu0 0.0
        %384 = vmatprep.subr.mxu0 0.0
        %385 = vmatpush1.xpose.msra.mxu0 0.0
        %386 = vmatprep.subr.mxu0 0.0
        %387 = vmatpush1.xpose.msra.mxu0 0.0
        %388 = vmatprep.subr.mxu0 0.0
        %389 = vmatpush1.xpose.msra.mxu0 0.0
        %390 = vmatprep.subr.mxu0 0.0
        %391 = vmatpush1.xpose.msra.mxu0 0.0
        %392 = vmatprep.subr.mxu0 0.0
        %393 = vmatpush1.xpose.msra.mxu0 0.0
        %394 = vmatprep.subr.mxu0 0.0
        %395 = vmatpush1.xpose.msra.mxu0 0.0
        %396 = vmatprep.subr.mxu0 0.0
        %397 = vmatpush1.xpose.msra.mxu0 0.0
        %398 = vmatprep.subr.mxu0 0.0
        %399 = vmatpush1.xpose.msra.mxu0 0.0
        %400 = vmatprep.subr.mxu0 0.0
        %401 = vmatpush1.xpose.msra.mxu0 0.0
        %402 = vmatprep.subr.mxu0 0.0
        %403 = vmatpush1.xpose.msra.mxu0 0.0
        %404 = vmatprep.subr.mxu0 0.0
        %405 = vmatpush1.xpose.msra.mxu0 0.0
        %406 = vmatprep.subr.mxu0 0.0
        %407 = vmatpush1.xpose.msra.mxu0 0.0
        %408 = vmatprep.subr.mxu0 0.0
        %409 = vmatpush1.xpose.msra.mxu0 0.0
        %410 = vmatprep.subr.mxu0 0.0
        %411 = vmatpush1.xpose.msra.mxu0 0.0
        %412 = vmatprep.subr.mxu0 0.0
        %413 = vmatpush1.xpose.msra.mxu0 0.0
        %414 = vmatprep.subr.mxu0 0.0
        %415 = vmatpush1.xpose.msra.mxu0 0.0
        %416 = vmatprep.subr.mxu0 0.0
        %417 = vmatpush1.xpose.msra.mxu0 0.0
        %418 = vmatprep.subr.mxu0 0.0
        %419 = vmatpush1.xpose.msra.mxu0 0.0
        %420 = vmatprep.subr.mxu0 0.0
        %421 = vmatpush1.xpose.msra.mxu0 0.0
        %422 = vmatprep.mubr.f32.mxu0 0.0
        %423 = vmatmul.mubr.f32.gmra.mrb[0].mxu0 %v347
        %v424 = vpop.f32.mrb[0].mxu0
        %v425 = vadd.f32 0.0, %v424
        %v426 = vpop.f32.mrb[0].mxu0
        %427 = vmatprep.mubr.f32.mxu0 0.0
        %428 = vmatmul.mubr.f32.gmra.mrb[0].mxu0 %v350
        %v429 = vpop.f32.mrb[0].mxu0
        %v430 = vadd.f32 0.0, %v429
        %v431 = vpop.f32.mrb[0].mxu0
        %432 = vdwg.mxu0
        %vm433 = vcmask 130048
        %v434 = vsel %vm433, %v425, -inf
        %435 = vmax.xlane.f32.xlu0 %v434
        %v436 = vpop.xlane.xlu0 %435
        %v437 = vsel %vm433, %v430, -inf
        %438 = vmax.xlane.f32.xlu0 %v437
        %v439 = vpop.xlane.xlu0 %438
        %v440 = vsub.f32 -inf, %v436
        %v441 = vsub.f32 -inf, %v439
        %v442 = vmul.f32 %v440, 1.442695
        %v443 = vpow.pop %v442
        %v444 = vmul.f32 %v441, 1.442695
        %v445 = vpow.pop %v444
        %v446 = vsub.f32 %v425, %v436
        %v447 = vsub.f32 %v430, %v439
        %v448 = vmul.f32 %v446, 1.442695
        %v449 = vpow.pop %v448
        %v450 = vmul.f32 %v447, 1.442695
        %v451 = vpow.pop %v450
        %v452 = vmul.f32 %v443, 0.0
        %v453 = vmul.f32 %v445, 0.0
        %v454 = vsel %vm433, %v449, 0.0
        %455 = vadd.xlane.f32.xlu0 %v454
        %v456 = vpop.xlane.xlu0 %455
        %v457 = vsel %vm433, %v451, 0.0
        %458 = vadd.xlane.f32.xlu0 %v457
        %v459 = vpop.xlane.xlu0 %458
        %v460 = vadd.f32 %v452, %v456
        %v461 = vadd.f32 %v453, %v459
        %v462 = vld [vmem:[#allocation9] sm:$0xff]
        %v463 = vld [vmem:[#allocation9 + $0x8] sm:$0xff]
        %v464 = vmul.f32 %v449, %v462
        %v465 = vmul.f32 %v451, %v463
        %v467 = vsel %vm433, %v464, 0
        %v470 = vsel %vm433, %v465, 0
        %472 = vmatprep.subr.mxu0 0.0
        %473 = vmatpush1.msra.mxu0 %v343
        %474 = vmatprep.subr.mxu0 0.0
        %475 = vmatpush1.msra.mxu0 %v344
        %476 = vmatprep.subr.mxu0 0.0
        %477 = vmatpush1.msra.mxu0 0.0
        %478 = vmatprep.subr.mxu0 0.0
        %479 = vmatpush1.msra.mxu0 0.0
        %480 = vmatprep.subr.mxu0 0.0
        %481 = vmatpush1.msra.mxu0 0.0
        %482 = vmatprep.subr.mxu0 0.0
        %483 = vmatpush1.msra.mxu0 0.0
        %484 = vmatprep.subr.mxu0 0.0
        %485 = vmatpush1.msra.mxu0 0.0
        %486 = vmatprep.subr.mxu0 0.0
        %487 = vmatpush1.msra.mxu0 0.0
        %488 = vmatprep.subr.mxu0 0.0
        %489 = vmatpush1.msra.mxu0 0.0
        %490 = vmatprep.subr.mxu0 0.0
        %491 = vmatpush1.msra.mxu0 0.0
        %492 = vmatprep.subr.mxu0 0.0
        %493 = vmatpush1.msra.mxu0 0.0
        %494 = vmatprep.subr.mxu0 0.0
        %495 = vmatpush1.msra.mxu0 0.0
        %496 = vmatprep.subr.mxu0 0.0
        %497 = vmatpush1.msra.mxu0 0.0
        %498 = vmatprep.subr.mxu0 0.0
        %499 = vmatpush1.msra.mxu0 0.0
        %500 = vmatprep.subr.mxu0 0.0
        %501 = vmatpush1.msra.mxu0 0.0
        %502 = vmatprep.subr.mxu0 0.0
        %503 = vmatpush1.msra.mxu0 0.0
        %504 = vmatprep.subr.mxu0 0.0
        %505 = vmatpush1.msra.mxu0 0.0
        %506 = vmatprep.subr.mxu0 0.0
        %507 = vmatpush1.msra.mxu0 0.0
        %508 = vmatprep.subr.mxu0 0.0
        %509 = vmatpush1.msra.mxu0 0.0
        %510 = vmatprep.subr.mxu0 0.0
        %511 = vmatpush1.msra.mxu0 0.0
        %512 = vmatprep.subr.mxu0 0.0
        %513 = vmatpush1.msra.mxu0 0.0
        %514 = vmatprep.subr.mxu0 0.0
        %515 = vmatpush1.msra.mxu0 0.0
        %516 = vmatprep.subr.mxu0 0.0
        %517 = vmatpush1.msra.mxu0 0.0
        %518 = vmatprep.subr.mxu0 0.0
        %519 = vmatpush1.msra.mxu0 0.0
        %520 = vmatprep.subr.mxu0 0.0
        %521 = vmatpush1.msra.mxu0 0.0
        %522 = vmatprep.subr.mxu0 0.0
        %523 = vmatpush1.msra.mxu0 0.0
        %524 = vmatprep.subr.mxu0 0.0
        %525 = vmatpush1.msra.mxu0 0.0
        %526 = vmatprep.subr.mxu0 0.0
        %527 = vmatpush1.msra.mxu0 0.0
        %528 = vmatprep.subr.mxu0 0.0
        %529 = vmatpush1.msra.mxu0 0.0
        %530 = vmatprep.subr.mxu0 0.0
        %531 = vmatpush1.msra.mxu0 0.0
        %532 = vmatprep.subr.mxu0 0.0
        %533 = vmatpush1.msra.mxu0 0.0
        %534 = vmatprep.subr.mxu0 0.0
        %535 = vmatpush1.msra.mxu0 0.0
        %536 = vmatprep.mubr.f32.mxu0 0.0
        %537 = vmatmul.mubr.f32.gmra.mrb[0].mxu0 %v467
        %v538 = vpop.f32.mrb[0].mxu0
        %v539 = vadd.f32 0.0, %v538
        %v540 = vpop.f32.mrb[0].mxu0
        %541 = vmatprep.mubr.f32.mxu0 0.0
        %542 = vmatmul.mubr.f32.gmra.mrb[0].mxu0 %v470
        %v543 = vpop.f32.mrb[0].mxu0
        %v544 = vadd.f32 0.0, %v543
        %v545 = vpop.f32.mrb[0].mxu0
        %546 = vdwg.mxu0
        %v547 = vadd.f32 %v452, %v539
        %v548 = vadd.f32 %v453, %v544
        %v549 = vrcp.pop %v460
        %v550 = vmul.f32 1.0, %v549
        %v551 = vrcp.pop %v461
        %v552 = vmul.f32 1.0, %v551
        %v553 = vmul.f32 %v547, %v550
        %v554 = vmul.f32 %v548, %v552
        %555 = vst.msk [vmem:[#allocation2] sm:$0xff] %vm345, %v553
        %556 = vst.msk [vmem:[#allocation2 + $0x8] sm:$0xff] %vm345, %v554
        %v557 = vld [vmem:[%s286] sm:$0xff]
        %v558 = vld [vmem:[%s286 + $0x8] sm:$0xff]
        %v559 = vld [vmem:[%s295] sm:$0xff]
        %v560 = vld [vmem:[%s295 + $0x8] sm:$0xff]
        %561 = vrot.lane.b32.xlu0 %v339, 120
        %v562 = vpop.permute.xlu0 %561
        %563 = vrot.lane.b32.xlu0 %v340, 120
        %v564 = vpop.permute.xlu0 %563
        %567 = vrot.lane.b32.xlu0 %v557, 120
        %v568 = vpop.permute.xlu0 %567
        %569 = vrot.lane.b32.xlu0 %v558, 120
        %v570 = vpop.permute.xlu0 %569
        %v571 = vsel %vm345, %v562, 0
        %v573 = vsel %vm345, %v564, 0
        %v575 = vsel %vm345, %v568, 0
        %v577 = vsel %vm345, %v570, 0
        %579 = vmatprep.subr.mxu0 0.0
        %580 = vmatpush1.xpose.msra.mxu0 %v575
        %581 = vmatprep.subr.mxu0 0.0
        %582 = vmatpush1.xpose.msra.mxu0 %v577
        %583 = vmatprep.subr.mxu0 0.0
        %584 = vmatpush1.xpose.msra.mxu0 0.0
        %585 = vmatprep.subr.mxu0 0.0
        %586 = vmatpush1.xpose.msra.mxu0 0.0
        %587 = vmatprep.subr.mxu0 0.0
        %588 = vmatpush1.xpose.msra.mxu0 0.0
        %589 = vmatprep.subr.mxu0 0.0
        %590 = vmatpush1.xpose.msra.mxu0 0.0
        %591 = vmatprep.subr.mxu0 0.0
        %592 = vmatpush1.xpose.msra.mxu0 0.0
        %593 = vmatprep.subr.mxu0 0.0
        %594 = vmatpush1.xpose.msra.mxu0 0.0
        %595 = vmatprep.subr.mxu0 0.0
        %596 = vmatpush1.xpose.msra.mxu0 0.0
        %597 = vmatprep.subr.mxu0 0.0
        %598 = vmatpush1.xpose.msra.mxu0 0.0
        %599 = vmatprep.subr.mxu0 0.0
        %600 = vmatpush1.xpose.msra.mxu0 0.0
        %601 = vmatprep.subr.mxu0 0.0
        %602 = vmatpush1.xpose.msra.mxu0 0.0
        %603 = vmatprep.subr.mxu0 0.0
        %604 = vmatpush1.xpose.msra.mxu0 0.0
        %605 = vmatprep.subr.mxu0 0.0
        %606 = vmatpush1.xpose.msra.mxu0 0.0
        %607 = vmatprep.subr.mxu0 0.0
        %608 = vmatpush1.xpose.msra.mxu0 0.0
        %609 = vmatprep.subr.mxu0 0.0
        %610 = vmatpush1.xpose.msra.mxu0 0.0
        %611 = vmatprep.subr.mxu0 0.0
        %612 = vmatpush1.xpose.msra.mxu0 0.0
        %613 = vmatprep.subr.mxu0 0.0
        %614 = vmatpush1.xpose.msra.mxu0 0.0
        %615 = vmatprep.subr.mxu0 0.0
        %616 = vmatpush1.xpose.msra.mxu0 0.0
        %617 = vmatprep.subr.mxu0 0.0
        %618 = vmatpush1.xpose.msra.mxu0 0.0
        %619 = vmatprep.subr.mxu0 0.0
        %620 = vmatpush1.xpose.msra.mxu0 0.0
        %621 = vmatprep.subr.mxu0 0.0
        %622 = vmatpush1.xpose.msra.mxu0 0.0
        %623 = vmatprep.subr.mxu0 0.0
        %624 = vmatpush1.xpose.msra.mxu0 0.0
        %625 = vmatprep.subr.mxu0 0.0
        %626 = vmatpush1.xpose.msra.mxu0 0.0
        %627 = vmatprep.subr.mxu0 0.0
        %628 = vmatpush1.xpose.msra.mxu0 0.0
        %629 = vmatprep.subr.mxu0 0.0
        %630 = vmatpush1.xpose.msra.mxu0 0.0
        %631 = vmatprep.subr.mxu0 0.0
        %632 = vmatpush1.xpose.msra.mxu0 0.0
        %633 = vmatprep.subr.mxu0 0.0
        %634 = vmatpush1.xpose.msra.mxu0 0.0
        %635 = vmatprep.subr.mxu0 0.0
        %636 = vmatpush1.xpose.msra.mxu0 0.0
        %637 = vmatprep.subr.mxu0 0.0
        %638 = vmatpush1.xpose.msra.mxu0 0.0
        %639 = vmatprep.subr.mxu0 0.0
        %640 = vmatpush1.xpose.msra.mxu0 0.0
        %641 = vmatprep.subr.mxu0 0.0
        %642 = vmatpush1.xpose.msra.mxu0 0.0
        %643 = vmatprep.mubr.f32.mxu0 0.0
        %644 = vmatmul.mubr.f32.gmra.mrb[0].mxu0 %v571
        %v645 = vpop.f32.mrb[0].mxu0
        %v646 = vadd.f32 0.0, %v645
        %v647 = vpop.f32.mrb[0].mxu0
        %648 = vmatprep.mubr.f32.mxu0 0.0
        %649 = vmatmul.mubr.f32.gmra.mrb[0].mxu0 %v573
        %v650 = vpop.f32.mrb[0].mxu0
        %v651 = vadd.f32 0.0, %v650
        %v652 = vpop.f32.mrb[0].mxu0
        %653 = vdwg.mxu0
        %v654 = vsel %vm433, %v646, -inf
        %655 = vmax.xlane.f32.xlu0 %v654
        %v656 = vpop.xlane.xlu0 %655
        %v657 = vsel %vm433, %v651, -inf
        %658 = vmax.xlane.f32.xlu0 %v657
        %v659 = vpop.xlane.xlu0 %658
        %v660 = vsub.f32 -inf, %v656
        %v661 = vsub.f32 -inf, %v659
        %v662 = vmul.f32 %v660, 1.442695
        %v663 = vpow.pop %v662
        %v664 = vmul.f32 %v661, 1.442695
        %v665 = vpow.pop %v664
        %v666 = vsub.f32 %v646, %v656
        %v667 = vsub.f32 %v651, %v659
        %v668 = vmul.f32 %v666, 1.442695
        %v669 = vpow.pop %v668
        %v670 = vmul.f32 %v667, 1.442695
        %v671 = vpow.pop %v670
        %v672 = vmul.f32 %v663, 0.0
        %v673 = vmul.f32 %v665, 0.0
        %v674 = vsel %vm433, %v669, 0.0
        %675 = vadd.xlane.f32.xlu0 %v674
        %v676 = vpop.xlane.xlu0 %675
        %v677 = vsel %vm433, %v671, 0.0
        %678 = vadd.xlane.f32.xlu0 %v677
        %v679 = vpop.xlane.xlu0 %678
        %v680 = vadd.f32 %v672, %v676
        %v681 = vadd.f32 %v673, %v679
        %v682 = vld [vmem:[#allocation9] sm:$0xff]
        %v683 = vld [vmem:[#allocation9 + $0x8] sm:$0xff]
        %v684 = vmul.f32 %v669, %v682
        %v685 = vmul.f32 %v671, %v683
        %688 = vrot.lane.b32.xlu0 %v559, 120
        %v689 = vpop.permute.xlu0 %688
        %690 = vrot.lane.b32.xlu0 %v560, 120
        %v691 = vpop.permute.xlu0 %690
        %v695 = vsel %vm433, %v684, 0
        %v698 = vsel %vm433, %v685, 0
        %700 = vmatprep.subr.mxu0 0.0
        %701 = vmatpush1.msra.mxu0 %v689
        %702 = vmatprep.subr.mxu0 0.0
        %703 = vmatpush1.msra.mxu0 %v691
        %704 = vmatprep.subr.mxu0 0.0
        %705 = vmatpush1.msra.mxu0 0.0
        %706 = vmatprep.subr.mxu0 0.0
        %707 = vmatpush1.msra.mxu0 0.0
        %708 = vmatprep.subr.mxu0 0.0
        %709 = vmatpush1.msra.mxu0 0.0
        %710 = vmatprep.subr.mxu0 0.0
        %711 = vmatpush1.msra.mxu0 0.0
        %712 = vmatprep.subr.mxu0 0.0
        %713 = vmatpush1.msra.mxu0 0.0
        %714 = vmatprep.subr.mxu0 0.0
        %715 = vmatpush1.msra.mxu0 0.0
        %716 = vmatprep.subr.mxu0 0.0
        %717 = vmatpush1.msra.mxu0 0.0
        %718 = vmatprep.subr.mxu0 0.0
        %719 = vmatpush1.msra.mxu0 0.0
        %720 = vmatprep.subr.mxu0 0.0
        %721 = vmatpush1.msra.mxu0 0.0
        %722 = vmatprep.subr.mxu0 0.0
        %723 = vmatpush1.msra.mxu0 0.0
        %724 = vmatprep.subr.mxu0 0.0
        %725 = vmatpush1.msra.mxu0 0.0
        %726 = vmatprep.subr.mxu0 0.0
        %727 = vmatpush1.msra.mxu0 0.0
        %728 = vmatprep.subr.mxu0 0.0
        %729 = vmatpush1.msra.mxu0 0.0
        %730 = vmatprep.subr.mxu0 0.0
        %731 = vmatpush1.msra.mxu0 0.0
        %732 = vmatprep.subr.mxu0 0.0
        %733 = vmatpush1.msra.mxu0 0.0
        %734 = vmatprep.subr.mxu0 0.0
        %735 = vmatpush1.msra.mxu0 0.0
        %736 = vmatprep.subr.mxu0 0.0
        %737 = vmatpush1.msra.mxu0 0.0
        %738 = vmatprep.subr.mxu0 0.0
        %739 = vmatpush1.msra.mxu0 0.0
        %740 = vmatprep.subr.mxu0 0.0
        %741 = vmatpush1.msra.mxu0 0.0
        %742 = vmatprep.subr.mxu0 0.0
        %743 = vmatpush1.msra.mxu0 0.0
        %744 = vmatprep.subr.mxu0 0.0
        %745 = vmatpush1.msra.mxu0 0.0
        %746 = vmatprep.subr.mxu0 0.0
        %747 = vmatpush1.msra.mxu0 0.0
        %748 = vmatprep.subr.mxu0 0.0
        %749 = vmatpush1.msra.mxu0 0.0
        %750 = vmatprep.subr.mxu0 0.0
        %751 = vmatpush1.msra.mxu0 0.0
        %752 = vmatprep.subr.mxu0 0.0
        %753 = vmatpush1.msra.mxu0 0.0
        %754 = vmatprep.subr.mxu0 0.0
        %755 = vmatpush1.msra.mxu0 0.0
        %756 = vmatprep.subr.mxu0 0.0
        %757 = vmatpush1.msra.mxu0 0.0
        %758 = vmatprep.subr.mxu0 0.0
        %759 = vmatpush1.msra.mxu0 0.0
        %760 = vmatprep.subr.mxu0 0.0
        %761 = vmatpush1.msra.mxu0 0.0
        %762 = vmatprep.subr.mxu0 0.0
        %763 = vmatpush1.msra.mxu0 0.0
        %764 = vmatprep.mubr.f32.mxu0 0.0
        %765 = vmatmul.mubr.f32.gmra.mrb[0].mxu0 %v695
        %v766 = vpop.f32.mrb[0].mxu0
        %v767 = vadd.f32 0.0, %v766
        %v768 = vpop.f32.mrb[0].mxu0
        %769 = vmatprep.mubr.f32.mxu0 0.0
        %770 = vmatmul.mubr.f32.gmra.mrb[0].mxu0 %v698
        %v771 = vpop.f32.mrb[0].mxu0
        %v772 = vadd.f32 0.0, %v771
        %v773 = vpop.f32.mrb[0].mxu0
        %774 = vdwg.mxu0
        %v775 = vadd.f32 %v672, %v767
        %v776 = vadd.f32 %v673, %v772
        %v777 = vrcp.pop %v680
        %v778 = vmul.f32 1.0, %v777
        %v779 = vrcp.pop %v681
        %v780 = vmul.f32 1.0, %v779
        %v781 = vmul.f32 %v775, %v778
        %v782 = vmul.f32 %v776, %v780
        %785 = vrot.lane.b32.xlu0 %v781, 8
        %v786 = vpop.permute.xlu0 %785
        %787 = vrot.lane.b32.xlu0 %v782, 8
        %v788 = vpop.permute.xlu0 %787
        %vm791 = vcmask 130112
        %792 = vst.msk [vmem:[#allocation2] sm:$0xff] %vm791, %v786
        %793 = vst.msk [vmem:[#allocation2 + $0x8] sm:$0xff] %vm791, %v788
        %v794 = vld [vmem:[%s286] sm:$0xff]
        %v795 = vld [vmem:[%s286 + $0x8] sm:$0xff]
        %v796 = vld [vmem:[%s295] sm:$0xff]
        %v797 = vld [vmem:[%s295 + $0x8] sm:$0xff]
        %798 = vrot.lane.b32.xlu0 %v339, 112
        %v799 = vpop.permute.xlu0 %798
        %800 = vrot.lane.b32.xlu0 %v340, 112
        %v801 = vpop.permute.xlu0 %800
        %804 = vrot.lane.b32.xlu0 %v794, 112
        %v805 = vpop.permute.xlu0 %804
        %806 = vrot.lane.b32.xlu0 %v795, 112
        %v807 = vpop.permute.xlu0 %806
        %v808 = vsel %vm345, %v799, 0
        %v810 = vsel %vm345, %v801, 0
        %v812 = vsel %vm345, %v805, 0
        %v814 = vsel %vm345, %v807, 0
        %816 = vmatprep.subr.mxu0 0.0
        %817 = vmatpush1.xpose.msra.mxu0 %v812
        %818 = vmatprep.subr.mxu0 0.0
        %819 = vmatpush1.xpose.msra.mxu0 %v814
        %820 = vmatprep.subr.mxu0 0.0
        %821 = vmatpush1.xpose.msra.mxu0 0.0
        %822 = vmatprep.subr.mxu0 0.0
        %823 = vmatpush1.xpose.msra.mxu0 0.0
        %824 = vmatprep.subr.mxu0 0.0
        %825 = vmatpush1.xpose.msra.mxu0 0.0
        %826 = vmatprep.subr.mxu0 0.0
        %827 = vmatpush1.xpose.msra.mxu0 0.0
        %828 = vmatprep.subr.mxu0 0.0
        %829 = vmatpush1.xpose.msra.mxu0 0.0
        %830 = vmatprep.subr.mxu0 0.0
        %831 = vmatpush1.xpose.msra.mxu0 0.0
        %832 = vmatprep.subr.mxu0 0.0
        %833 = vmatpush1.xpose.msra.mxu0 0.0
        %834 = vmatprep.subr.mxu0 0.0
        %835 = vmatpush1.xpose.msra.mxu0 0.0
        %836 = vmatprep.subr.mxu0 0.0
        %837 = vmatpush1.xpose.msra.mxu0 0.0
        %838 = vmatprep.subr.mxu0 0.0
        %839 = vmatpush1.xpose.msra.mxu0 0.0
        %840 = vmatprep.subr.mxu0 0.0
        %841 = vmatpush1.xpose.msra.mxu0 0.0
        %842 = vmatprep.subr.mxu0 0.0
        %843 = vmatpush1.xpose.msra.mxu0 0.0
        %844 = vmatprep.subr.mxu0 0.0
        %845 = vmatpush1.xpose.msra.mxu0 0.0
        %846 = vmatprep.subr.mxu0 0.0
        %847 = vmatpush1.xpose.msra.mxu0 0.0
        %848 = vmatprep.subr.mxu0 0.0
        %849 = vmatpush1.xpose.msra.mxu0 0.0
        %850 = vmatprep.subr.mxu0 0.0
        %851 = vmatpush1.xpose.msra.mxu0 0.0
        %852 = vmatprep.subr.mxu0 0.0
        %853 = vmatpush1.xpose.msra.mxu0 0.0
        %854 = vmatprep.subr.mxu0 0.0
        %855 = vmatpush1.xpose.msra.mxu0 0.0
        %856 = vmatprep.subr.mxu0 0.0
        %857 = vmatpush1.xpose.msra.mxu0 0.0
        %858 = vmatprep.subr.mxu0 0.0
        %859 = vmatpush1.xpose.msra.mxu0 0.0
        %860 = vmatprep.subr.mxu0 0.0
        %861 = vmatpush1.xpose.msra.mxu0 0.0
        %862 = vmatprep.subr.mxu0 0.0
        %863 = vmatpush1.xpose.msra.mxu0 0.0
        %864 = vmatprep.subr.mxu0 0.0
        %865 = vmatpush1.xpose.msra.mxu0 0.0
        %866 = vmatprep.subr.mxu0 0.0
        %867 = vmatpush1.xpose.msra.mxu0 0.0
        %868 = vmatprep.subr.mxu0 0.0
        %869 = vmatpush1.xpose.msra.mxu0 0.0
        %870 = vmatprep.subr.mxu0 0.0
        %871 = vmatpush1.xpose.msra.mxu0 0.0
        %872 = vmatprep.subr.mxu0 0.0
        %873 = vmatpush1.xpose.msra.mxu0 0.0
        %874 = vmatprep.subr.mxu0 0.0
        %875 = vmatpush1.xpose.msra.mxu0 0.0
        %876 = vmatprep.subr.mxu0 0.0
        %877 = vmatpush1.xpose.msra.mxu0 0.0
        %878 = vmatprep.subr.mxu0 0.0
        %879 = vmatpush1.xpose.msra.mxu0 0.0
        %880 = vmatprep.mubr.f32.mxu0 0.0
        %881 = vmatmul.mubr.f32.gmra.mrb[0].mxu0 %v808
        %v882 = vpop.f32.mrb[0].mxu0
        %v883 = vadd.f32 0.0, %v882
        %v884 = vpop.f32.mrb[0].mxu0
        %885 = vmatprep.mubr.f32.mxu0 0.0
        %886 = vmatmul.mubr.f32.gmra.mrb[0].mxu0 %v810
        %v887 = vpop.f32.mrb[0].mxu0
        %v888 = vadd.f32 0.0, %v887
        %v889 = vpop.f32.mrb[0].mxu0
        %890 = vdwg.mxu0
        %v891 = vsel %vm433, %v883, -inf
        %892 = vmax.xlane.f32.xlu0 %v891
        %v893 = vpop.xlane.xlu0 %892
        %v894 = vsel %vm433, %v888, -inf
        %895 = vmax.xlane.f32.xlu0 %v894
        %v896 = vpop.xlane.xlu0 %895
        %v897 = vsub.f32 -inf, %v893
        %v898 = vsub.f32 -inf, %v896
        %v899 = vmul.f32 %v897, 1.442695
        %v900 = vpow.pop %v899
        %v901 = vmul.f32 %v898, 1.442695
        %v902 = vpow.pop %v901
        %v903 = vsub.f32 %v883, %v893
        %v904 = vsub.f32 %v888, %v896
        %v905 = vmul.f32 %v903, 1.442695
        %v906 = vpow.pop %v905
        %v907 = vmul.f32 %v904, 1.442695
        %v908 = vpow.pop %v907
        %v909 = vmul.f32 %v900, 0.0
        %v910 = vmul.f32 %v902, 0.0
        %v911 = vsel %vm433, %v906, 0.0
        %912 = vadd.xlane.f32.xlu0 %v911
        %v913 = vpop.xlane.xlu0 %912
        %v914 = vsel %vm433, %v908, 0.0
        %915 = vadd.xlane.f32.xlu0 %v914
        %v916 = vpop.xlane.xlu0 %915
        %v917 = vadd.f32 %v909, %v913
        %v918 = vadd.f32 %v910, %v916
        %v919 = vld [vmem:[#allocation9] sm:$0xff]
        %v920 = vld [vmem:[#allocation9 + $0x8] sm:$0xff]
        %v921 = vmul.f32 %v906, %v919
        %v922 = vmul.f32 %v908, %v920
        %925 = vrot.lane.b32.xlu0 %v796, 112
        %v926 = vpop.permute.xlu0 %925
        %927 = vrot.lane.b32.xlu0 %v797, 112
        %v928 = vpop.permute.xlu0 %927
        %v932 = vsel %vm433, %v921, 0
        %v935 = vsel %vm433, %v922, 0
        %937 = vmatprep.subr.mxu0 0.0
        %938 = vmatpush1.msra.mxu0 %v926
        %939 = vmatprep.subr.mxu0 0.0
        %940 = vmatpush1.msra.mxu0 %v928
        %941 = vmatprep.subr.mxu0 0.0
        %942 = vmatpush1.msra.mxu0 0.0
        %943 = vmatprep.subr.mxu0 0.0
        %944 = vmatpush1.msra.mxu0 0.0
        %945 = vmatprep.subr.mxu0 0.0
        %946 = vmatpush1.msra.mxu0 0.0
        %947 = vmatprep.subr.mxu0 0.0
        %948 = vmatpush1.msra.mxu0 0.0
        %949 = vmatprep.subr.mxu0 0.0
        %950 = vmatpush1.msra.mxu0 0.0
        %951 = vmatprep.subr.mxu0 0.0
        %952 = vmatpush1.msra.mxu0 0.0
        %953 = vmatprep.subr.mxu0 0.0
        %954 = vmatpush1.msra.mxu0 0.0
        %955 = vmatprep.subr.mxu0 0.0
        %956 = vmatpush1.msra.mxu0 0.0
        %957 = vmatprep.subr.mxu0 0.0
        %958 = vmatpush1.msra.mxu0 0.0
        %959 = vmatprep.subr.mxu0 0.0
        %960 = vmatpush1.msra.mxu0 0.0
        %961 = vmatprep.subr.mxu0 0.0
        %962 = vmatpush1.msra.mxu0 0.0
        %963 = vmatprep.subr.mxu0 0.0
        %964 = vmatpush1.msra.mxu0 0.0
        %965 = vmatprep.subr.mxu0 0.0
        %966 = vmatpush1.msra.mxu0 0.0
        %967 = vmatprep.subr.mxu0 0.0
        %968 = vmatpush1.msra.mxu0 0.0
        %969 = vmatprep.subr.mxu0 0.0
        %970 = vmatpush1.msra.mxu0 0.0
        %971 = vmatprep.subr.mxu0 0.0
        %972 = vmatpush1.msra.mxu0 0.0
        %973 = vmatprep.subr.mxu0 0.0
        %974 = vmatpush1.msra.mxu0 0.0
        %975 = vmatprep.subr.mxu0 0.0
        %976 = vmatpush1.msra.mxu0 0.0
        %977 = vmatprep.subr.mxu0 0.0
        %978 = vmatpush1.msra.mxu0 0.0
        %979 = vmatprep.subr.mxu0 0.0
        %980 = vmatpush1.msra.mxu0 0.0
        %981 = vmatprep.subr.mxu0 0.0
        %982 = vmatpush1.msra.mxu0 0.0
        %983 = vmatprep.subr.mxu0 0.0
        %984 = vmatpush1.msra.mxu0 0.0
        %985 = vmatprep.subr.mxu0 0.0
        %986 = vmatpush1.msra.mxu0 0.0
        %987 = vmatprep.subr.mxu0 0.0
        %988 = vmatpush1.msra.mxu0 0.0
        %989 = vmatprep.subr.mxu0 0.0
        %990 = vmatpush1.msra.mxu0 0.0
        %991 = vmatprep.subr.mxu0 0.0
        %992 = vmatpush1.msra.mxu0 0.0
        %993 = vmatprep.subr.mxu0 0.0
        %994 = vmatpush1.msra.mxu0 0.0
        %995 = vmatprep.subr.mxu0 0.0
        %996 = vmatpush1.msra.mxu0 0.0
        %997 = vmatprep.subr.mxu0 0.0
        %998 = vmatpush1.msra.mxu0 0.0
        %999 = vmatprep.subr.mxu0 0.0
        %1000 = vmatpush1.msra.mxu0 0.0
        %1001 = vmatprep.mubr.f32.mxu0 0.0
        %1002 = vmatmul.mubr.f32.gmra.mrb[0].mxu0 %v932
        %v1003 = vpop.f32.mrb[0].mxu0
        %v1004 = vadd.f32 0.0, %v1003
        %v1005 = vpop.f32.mrb[0].mxu0
        %1006 = vmatprep.mubr.f32.mxu0 0.0
        %1007 = vmatmul.mubr.f32.gmra.mrb[0].mxu0 %v935
        %v1008 = vpop.f32.mrb[0].mxu0
        %v1009 = vadd.f32 0.0, %v1008
        %v1010 = vpop.f32.mrb[0].mxu0
        %1011 = vdwg.mxu0
        %v1012 = vadd.f32 %v909, %v1004
        %v1013 = vadd.f32 %v910, %v1009
        %v1014 = vrcp.pop %v917
        %v1015 = vmul.f32 1.0, %v1014
        %v1016 = vrcp.pop %v918
        %v1017 = vmul.f32 1.0, %v1016
        %v1018 = vmul.f32 %v1012, %v1015
        %v1019 = vmul.f32 %v1013, %v1017
        %1022 = vrot.lane.b32.xlu0 %v1018, 16
        %v1023 = vpop.permute.xlu0 %1022
        %1024 = vrot.lane.b32.xlu0 %v1019, 16
        %v1025 = vpop.permute.xlu0 %1024
        %vm1028 = vcmask 195712
        %1029 = vst.msk [vmem:[#allocation2] sm:$0xff] %vm1028, %v1023
        %1030 = vst.msk [vmem:[#allocation2 + $0x8] sm:$0xff] %vm1028, %v1025
        %v1031 = vld [vmem:[%s286] sm:$0xff]
        %v1032 = vld [vmem:[%s286 + $0x8] sm:$0xff]
        %v1033 = vld [vmem:[%s295] sm:$0xff]
        %v1034 = vld [vmem:[%s295 + $0x8] sm:$0xff]
        %1035 = vrot.lane.b32.xlu0 %v339, 104
        %v1036 = vpop.permute.xlu0 %1035
        %1037 = vrot.lane.b32.xlu0 %v340, 104
        %v1038 = vpop.permute.xlu0 %1037
        %1041 = vrot.lane.b32.xlu0 %v1031, 104
        %v1042 = vpop.permute.xlu0 %1041
        %1043 = vrot.lane.b32.xlu0 %v1032, 104
        %v1044 = vpop.permute.xlu0 %1043
        %v1045 = vsel %vm345, %v1036, 0
        %v1047 = vsel %vm345, %v1038, 0
        %v1049 = vsel %vm345, %v1042, 0
        %v1051 = vsel %vm345, %v1044, 0
        %1053 = vmatprep.subr.mxu0 0.0
        %1054 = vmatpush1.xpose.msra.mxu0 %v1049
        %1055 = vmatprep.subr.mxu0 0.0
        %1056 = vmatpush1.xpose.msra.mxu0 %v1051
        %1057 = vmatprep.subr.mxu0 0.0
        %1058 = vmatpush1.xpose.msra.mxu0 0.0
        %1059 = vmatprep.subr.mxu0 0.0
        %1060 = vmatpush1.xpose.msra.mxu0 0.0
        %1061 = vmatprep.subr.mxu0 0.0
        %1062 = vmatpush1.xpose.msra.mxu0 0.0
        %1063 = vmatprep.subr.mxu0 0.0
        %1064 = vmatpush1.xpose.msra.mxu0 0.0
        %1065 = vmatprep.subr.mxu0 0.0
        %1066 = vmatpush1.xpose.msra.mxu0 0.0
        %1067 = vmatprep.subr.mxu0 0.0
        %1068 = vmatpush1.xpose.msra.mxu0 0.0
        %1069 = vmatprep.subr.mxu0 0.0
        %1070 = vmatpush1.xpose.msra.mxu0 0.0
        %1071 = vmatprep.subr.mxu0 0.0
        %1072 = vmatpush1.xpose.msra.mxu0 0.0
        %1073 = vmatprep.subr.mxu0 0.0
        %1074 = vmatpush1.xpose.msra.mxu0 0.0
        %1075 = vmatprep.subr.mxu0 0.0
        %1076 = vmatpush1.xpose.msra.mxu0 0.0
        %1077 = vmatprep.subr.mxu0 0.0
        %1078 = vmatpush1.xpose.msra.mxu0 0.0
        %1079 = vmatprep.subr.mxu0 0.0
        %1080 = vmatpush1.xpose.msra.mxu0 0.0
        %1081 = vmatprep.subr.mxu0 0.0
        %1082 = vmatpush1.xpose.msra.mxu0 0.0
        %1083 = vmatprep.subr.mxu0 0.0
        %1084 = vmatpush1.xpose.msra.mxu0 0.0
        %1085 = vmatprep.subr.mxu0 0.0
        %1086 = vmatpush1.xpose.msra.mxu0 0.0
        %1087 = vmatprep.subr.mxu0 0.0
        %1088 = vmatpush1.xpose.msra.mxu0 0.0
        %1089 = vmatprep.subr.mxu0 0.0
        %1090 = vmatpush1.xpose.msra.mxu0 0.0
        %1091 = vmatprep.subr.mxu0 0.0
        %1092 = vmatpush1.xpose.msra.mxu0 0.0
        %1093 = vmatprep.subr.mxu0 0.0
        %1094 = vmatpush1.xpose.msra.mxu0 0.0
        %1095 = vmatprep.subr.mxu0 0.0
        %1096 = vmatpush1.xpose.msra.mxu0 0.0
        %1097 = vmatprep.subr.mxu0 0.0
        %1098 = vmatpush1.xpose.msra.mxu0 0.0
        %1099 = vmatprep.subr.mxu0 0.0
        %1100 = vmatpush1.xpose.msra.mxu0 0.0
        %1101 = vmatprep.subr.mxu0 0.0
        %1102 = vmatpush1.xpose.msra.mxu0 0.0
        %1103 = vmatprep.subr.mxu0 0.0
        %1104 = vmatpush1.xpose.msra.mxu0 0.0
        %1105 = vmatprep.subr.mxu0 0.0
        %1106 = vmatpush1.xpose.msra.mxu0 0.0
        %1107 = vmatprep.subr.mxu0 0.0
        %1108 = vmatpush1.xpose.msra.mxu0 0.0
        %1109 = vmatprep.subr.mxu0 0.0
        %1110 = vmatpush1.xpose.msra.mxu0 0.0
        %1111 = vmatprep.subr.mxu0 0.0
        %1112 = vmatpush1.xpose.msra.mxu0 0.0
        %1113 = vmatprep.subr.mxu0 0.0
        %1114 = vmatpush1.xpose.msra.mxu0 0.0
        %1115 = vmatprep.subr.mxu0 0.0
        %1116 = vmatpush1.xpose.msra.mxu0 0.0
        %1117 = vmatprep.mubr.f32.mxu0 0.0
        %1118 = vmatmul.mubr.f32.gmra.mrb[0].mxu0 %v1045
        %v1119 = vpop.f32.mrb[0].mxu0
        %v1120 = vadd.f32 0.0, %v1119
        %v1121 = vpop.f32.mrb[0].mxu0
        %1122 = vmatprep.mubr.f32.mxu0 0.0
        %1123 = vmatmul.mubr.f32.gmra.mrb[0].mxu0 %v1047
        %v1124 = vpop.f32.mrb[0].mxu0
        %v1125 = vadd.f32 0.0, %v1124
        %v1126 = vpop.f32.mrb[0].mxu0
        %1127 = vdwg.mxu0
        %v1128 = vsel %vm433, %v1120, -inf
        %1129 = vmax.xlane.f32.xlu0 %v1128
        %v1130 = vpop.xlane.xlu0 %1129
        %v1131 = vsel %vm433, %v1125, -inf
        %1132 = vmax.xlane.f32.xlu0 %v1131
        %v1133 = vpop.xlane.xlu0 %1132
        %v1134 = vsub.f32 -inf, %v1130
        %v1135 = vsub.f32 -inf, %v1133
        %v1136 = vmul.f32 %v1134, 1.442695
        %v1137 = vpow.pop %v1136
        %v1138 = vmul.f32 %v1135, 1.442695
        %v1139 = vpow.pop %v1138
        %v1140 = vsub.f32 %v1120, %v1130
        %v1141 = vsub.f32 %v1125, %v1133
        %v1142 = vmul.f32 %v1140, 1.442695
        %v1143 = vpow.pop %v1142
        %v1144 = vmul.f32 %v1141, 1.442695
        %v1145 = vpow.pop %v1144
        %v1146 = vmul.f32 %v1137, 0.0
        %v1147 = vmul.f32 %v1139, 0.0
        %v1148 = vsel %vm433, %v1143, 0.0
        %1149 = vadd.xlane.f32.xlu0 %v1148
        %v1150 = vpop.xlane.xlu0 %1149
        %v1151 = vsel %vm433, %v1145, 0.0
        %1152 = vadd.xlane.f32.xlu0 %v1151
        %v1153 = vpop.xlane.xlu0 %1152
        %v1154 = vadd.f32 %v1146, %v1150
        %v1155 = vadd.f32 %v1147, %v1153
        %v1156 = vld [vmem:[#allocation9] sm:$0xff]
        %v1157 = vld [vmem:[#allocation9 + $0x8] sm:$0xff]
        %v1158 = vmul.f32 %v1143, %v1156
        %v1159 = vmul.f32 %v1145, %v1157
        %1162 = vrot.lane.b32.xlu0 %v1033, 104
        %v1163 = vpop.permute.xlu0 %1162
        %1164 = vrot.lane.b32.xlu0 %v1034, 104
        %v1165 = vpop.permute.xlu0 %1164
        %v1169 = vsel %vm433, %v1158, 0
        %v1172 = vsel %vm433, %v1159, 0
        %1174 = vmatprep.subr.mxu0 0.0
        %1175 = vmatpush1.msra.mxu0 %v1163
        %1176 = vmatprep.subr.mxu0 0.0
        %1177 = vmatpush1.msra.mxu0 %v1165
        %1178 = vmatprep.subr.mxu0 0.0
        %1179 = vmatpush1.msra.mxu0 0.0
        %1180 = vmatprep.subr.mxu0 0.0
        %1181 = vmatpush1.msra.mxu0 0.0
        %1182 = vmatprep.subr.mxu0 0.0
        %1183 = vmatpush1.msra.mxu0 0.0
        %1184 = vmatprep.subr.mxu0 0.0
        %1185 = vmatpush1.msra.mxu0 0.0
        %1186 = vmatprep.subr.mxu0 0.0
        %1187 = vmatpush1.msra.mxu0 0.0
        %1188 = vmatprep.subr.mxu0 0.0
        %1189 = vmatpush1.msra.mxu0 0.0
        %1190 = vmatprep.subr.mxu0 0.0
        %1191 = vmatpush1.msra.mxu0 0.0
        %1192 = vmatprep.subr.mxu0 0.0
        %1193 = vmatpush1.msra.mxu0 0.0
        %1194 = vmatprep.subr.mxu0 0.0
        %1195 = vmatpush1.msra.mxu0 0.0
        %1196 = vmatprep.subr.mxu0 0.0
        %1197 = vmatpush1.msra.mxu0 0.0
        %1198 = vmatprep.subr.mxu0 0.0
        %1199 = vmatpush1.msra.mxu0 0.0
        %1200 = vmatprep.subr.mxu0 0.0
        %1201 = vmatpush1.msra.mxu0 0.0
        %1202 = vmatprep.subr.mxu0 0.0
        %1203 = vmatpush1.msra.mxu0 0.0
        %1204 = vmatprep.subr.mxu0 0.0
        %1205 = vmatpush1.msra.mxu0 0.0
        %1206 = vmatprep.subr.mxu0 0.0
        %1207 = vmatpush1.msra.mxu0 0.0
        %1208 = vmatprep.subr.mxu0 0.0
        %1209 = vmatpush1.msra.mxu0 0.0
        %1210 = vmatprep.subr.mxu0 0.0
        %1211 = vmatpush1.msra.mxu0 0.0
        %1212 = vmatprep.subr.mxu0 0.0
        %1213 = vmatpush1.msra.mxu0 0.0
        %1214 = vmatprep.subr.mxu0 0.0
        %1215 = vmatpush1.msra.mxu0 0.0
        %1216 = vmatprep.subr.mxu0 0.0
        %1217 = vmatpush1.msra.mxu0 0.0
        %1218 = vmatprep.subr.mxu0 0.0
        %1219 = vmatpush1.msra.mxu0 0.0
        %1220 = vmatprep.subr.mxu0 0.0
        %1221 = vmatpush1.msra.mxu0 0.0
        %1222 = vmatprep.subr.mxu0 0.0
        %1223 = vmatpush1.msra.mxu0 0.0
        %1224 = vmatprep.subr.mxu0 0.0
        %1225 = vmatpush1.msra.mxu0 0.0
        %1226 = vmatprep.subr.mxu0 0.0
        %1227 = vmatpush1.msra.mxu0 0.0
        %1228 = vmatprep.subr.mxu0 0.0
        %1229 = vmatpush1.msra.mxu0 0.0
        %1230 = vmatprep.subr.mxu0 0.0
        %1231 = vmatpush1.msra.mxu0 0.0
        %1232 = vmatprep.subr.mxu0 0.0
        %1233 = vmatpush1.msra.mxu0 0.0
        %1234 = vmatprep.subr.mxu0 0.0
        %1235 = vmatpush1.msra.mxu0 0.0
        %1236 = vmatprep.subr.mxu0 0.0
        %1237 = vmatpush1.msra.mxu0 0.0
        %1238 = vmatprep.mubr.f32.mxu0 0.0
        %1239 = vmatmul.mubr.f32.gmra.mrb[0].mxu0 %v1169
        %v1240 = vpop.f32.mrb[0].mxu0
        %v1241 = vadd.f32 0.0, %v1240
        %v1242 = vpop.f32.mrb[0].mxu0
        %1243 = vmatprep.mubr.f32.mxu0 0.0
        %1244 = vmatmul.mubr.f32.gmra.mrb[0].mxu0 %v1172
        %v1245 = vpop.f32.mrb[0].mxu0
        %v1246 = vadd.f32 0.0, %v1245
        %v1247 = vpop.f32.mrb[0].mxu0
        %1248 = vdwg.mxu0
        %v1249 = vadd.f32 %v1146, %v1241
        %v1250 = vadd.f32 %v1147, %v1246
        %v1251 = vrcp.pop %v1154
        %v1252 = vmul.f32 1.0, %v1251
        %v1253 = vrcp.pop %v1155
        %v1254 = vmul.f32 1.0, %v1253
        %v1255 = vmul.f32 %v1249, %v1252
        %v1256 = vmul.f32 %v1250, %v1254
        %1259 = vrot.lane.b32.xlu0 %v1255, 24
        %v1260 = vpop.permute.xlu0 %1259
        %1261 = vrot.lane.b32.xlu0 %v1256, 24
        %v1262 = vpop.permute.xlu0 %1261
        %vm1265 = vcmask 261312
        %1266 = vst.msk [vmem:[#allocation2] sm:$0xff] %vm1265, %v1260
        %1267 = vst.msk [vmem:[#allocation2 + $0x8] sm:$0xff] %vm1265, %v1262
        %v1268 = vld [vmem:[#allocation2] sm:$0xff]
        %v1269 = vld [vmem:[#allocation2 + $0x8] sm:$0xff]
        %vm1270 = vcmask 261120
        %1271 = vst.msk [vmem:[%s333] sm:$0xff] %vm1270, %v1268
        %1272 = vst.msk [vmem:[%s333 + $0x8] sm:$0xff] %vm1270, %v1269
        %s1273 = sand.u32 %s153, 1
        %s1274 = scalar_lea.sflag [#allocation5], %s1273
        %s1275 = sand.u32 %s153, 1
        %s1276 = smul.addr %s1275, 16
        %s1277 = scalar_lea.vmem [#allocation11], %s1276
        // Predicated region
        $region53: #{tpu_custom_call.1} parent=35 // pred_check
          %p1278 = pneg %p163
        $region54: #{tpu_custom_call.1} parent=35 // pred_check_branch
          %1280 = sbr.rel (%p1278) target = $region56
        $region55: #{tpu_custom_call.1} parent=35 // pred_region
          %s1281 = smul.u32 2, %s30
          %s1283 = ssub.s32 256, 256
          %1284 = vsyncadd %s1274, %s1283
          %s1285 = smul.addr %s29, 2
          %s1286 = sadd.s32 %s1281, %s1285
          %s1287 = smul.addr %s1286, 128
          %s1288 = scalar_lea.hbm %s4, %s1287
          %s1289 = sshll.u32 %s1277, 4
          %s1290 = int_to_ptr.vmem [resolvable:$true] %s1289
          %1295 = dma.vmem_to_hbm [thread:$0]  %s1290, 256, %s1288, %s1274, 128, 128, 8
        $region56: #{tpu_custom_call.1} parent=35 // pred_fallthru
          _
      $region36: #{tpu_custom_call.1} parent=5 // pred_fallthru
        _
      %p1296 = scmp.le.s32.totalorder 2, %s20
      // Predicated region
      $region57: #{tpu_custom_call.1} parent=5 // pred_check
        %p1297 = pneg %p1296
      $region58: #{tpu_custom_call.1} parent=5 // pred_check_branch
        %1299 = sbr.rel (%p1297) target = $region60
      $region59: #{tpu_custom_call.1} parent=5 // pred_region
        %s1300 = ssub.s32 %s20, 2
        // Predicated region
        $region61: #{tpu_custom_call.1} parent=59 // pred_check
          %p1301 = pneg %p169
        $region62: #{tpu_custom_call.1} parent=59 // pred_check_branch
          %1303 = sbr.rel (%p1301) target = $region64
        $region63: #{tpu_custom_call.1} parent=59 // pred_region
          %s1304 = sand.u32 %s154, 1
          %s1305 = scalar_lea.sflag [#allocation5], %s1304
          %s1306 = sand.u32 %s154, 1
          %s1307 = smul.addr %s1306, 16
          %s1308 = scalar_lea.vmem [#allocation11], %s1307
          %1309 = dma.done %s1305, 256
        $region64: #{tpu_custom_call.1} parent=59 // pred_fallthru
          _
      $region60: #{tpu_custom_call.1} parent=5 // pred_fallthru
        _
    $region6: #{tpu_custom_call.1} parent=1 // loop_footer
      %s24 = sadd.s32 1, %s20
    $region7: #{tpu_custom_call.1} parent=1 // loop_footer_branch
      %19 = sbr.rel target = $region3
    $region8: #{tpu_custom_call.1} parent=1 // loop_exit
      _
    %1310 = vsyncpa [#allocation4], 1
    %s1311 = scalar_lea.sflag [#allocation4], 1
    %1312 = vsyncpa %s1311, 1
    %1313 = vsyncpa [#allocation7], 1
    %s1314 = scalar_lea.sflag [#allocation7], 1
    %1315 = vsyncpa %s1314, 1
    %1316 = vsyncpa [#allocation10], 1
    %1317 = vsyncpa [#allocation5], 1
    %s1318 = scalar_lea.sflag [#allocation5], 1
    %1319 = vsyncpa %s1318, 1

</llo_original>
